<compile_context>
chip_gen: v7x
topology: tpu7x:2x2x1
jax: 0.10.0
libtpu: 0.0.40
codegen_flags: <defaults>
</compile_context>

<pallas_src>
import functools

import jax
import jax.numpy as jnp
from jax.experimental import pallas as pl
from jax.experimental.pallas import tpu as pltpu

LANE = 128  # lane-dense padding for the FC output


def seq2seq_kernel(t_enc, t_dec,
                   x_ref, h0_ref, win_ref, bin_ref,
                   whh_e_ref, whh_d_ref, wfc_ref, bfc_ref,
                   out_ref):
    bp, h_dim = h0_ref.shape

    # ---- prologue: fused (enc + dec) input projection, RNN biases pre-folded ----------
    # xproj[:, :H]  uses Wih_e^T (+ b_ih_e + b_hh_e)   -> encoder rows (first t_enc*bp)
    # xproj[:, H:]  uses Wih_d^T (+ b_ih_d + b_hh_d)   -> decoder rows (last  t_dec*bp)
    xproj = (jnp.dot(x_ref[...], win_ref[...], preferred_element_type=jnp.float32)
             + bin_ref[...])
    xe = xproj[:t_enc * bp, :h_dim]            # (t_enc*bp, H), sliced once (not per step)
    xd = xproj[t_enc * bp:, h_dim:]            # (t_dec*bp, H)

    whh_e = whh_e_ref[...]
    whh_d = whh_d_ref[...]

    # ---- encoder recurrence: h_t = tanh(xe_t + h_{t-1} @ W_hh_e) (unrolled, serial) ----
    h = h0_ref[...]
    for t in range(t_enc):
        h = jnp.tanh(xe[t * bp:(t + 1) * bp, :]
                     + jnp.dot(h, whh_e, preferred_element_type=jnp.float32))

    # ---- decoder recurrence; hidden-state stack kept in registers (no VMEM scratch) ----
    hs = []
    for t in range(t_dec):
        h = jnp.tanh(xd[t * bp:(t + 1) * bp, :]
                     + jnp.dot(h, whh_d, preferred_element_type=jnp.float32))
        hs.append(h)
    hid = jnp.concatenate(hs, axis=0)          # (t_dec*bp, H), ~2 vregs

    # ---- fused output projection (single matmul), single lane-dense output store ------
    out_ref[...] = (jnp.dot(hid, wfc_ref[...], preferred_element_type=jnp.float32)
                    + bfc_ref[...]).astype(out_ref.dtype)


def prepare_params(p):
    """One-time parameter prep (hoisted out of the per-call path): transpose weights so the
    kernel computes x @ W == PyTorch's x @ W^T, fold the two RNN biases, fuse the two input
    projections column-wise, and lane-pad the FC weight/bias to 128 lanes."""
    n_hidden = p['whh_e'].shape[0]
    n_class = p['wfc'].shape[0]
    win = jnp.concatenate([p['wih_e'].T, p['wih_d'].T], axis=1)            # (C, 2H)
    b_in = jnp.concatenate([p['bih_e'] + p['bhh_e'],
                            p['bih_d'] + p['bhh_d']])[None, :]             # (1, 2H)
    wfc = jnp.zeros((n_hidden, LANE), jnp.float32).at[:, :n_class].set(p['wfc'].T)
    bfc = jnp.zeros((1, LANE), jnp.float32).at[0, :n_class].set(p['bfc'])
    return dict(win=win, b_in=b_in,
                whh_e=p['whh_e'].T, whh_d=p['whh_d'].T,
                wfc=wfc, bfc=bfc)


def _pad_batch(x, bp):
    b = x.shape[0]
    if bp == b:
        return x
    return jnp.pad(x, ((0, bp - b),) + ((0, 0),) * (x.ndim - 1))


def seq2seq_forward(enc_input, enc_hidden, dec_input, pp):
    """enc_input: (B, T_enc, C) f32; enc_hidden: (1, B, H) f32; dec_input: (B, T_dec, C) f32.
    pp: output of prepare_params. Returns (B, T_dec, C) f32 — same as the PyTorch forward."""
    B, T_enc, C = enc_input.shape
    _, T_dec, _ = dec_input.shape
    H = enc_hidden.shape[-1]
    Bp = ((B + 7) // 8) * 8                    # sublane-align the per-step batch block

    # Time-major, batch-padded, flattened sequences; enc rows first, dec rows after.
    enc2d = jnp.transpose(_pad_batch(enc_input, Bp), (1, 0, 2)).reshape(T_enc * Bp, C)
    dec2d = jnp.transpose(_pad_batch(dec_input, Bp), (1, 0, 2)).reshape(T_dec * Bp, C)
    x2d = jnp.concatenate([enc2d, dec2d], axis=0)          # ((T_enc+T_dec)*Bp, C)
    h0 = _pad_batch(enc_hidden[0], Bp)                      # (Bp, H)

    vmem = pl.BlockSpec(memory_space=pltpu.MemorySpace.VMEM)
    out = pl.pallas_call(
        functools.partial(seq2seq_kernel, T_enc, T_dec),
        out_shape=jax.ShapeDtypeStruct((T_dec * Bp, LANE), jnp.float32),
        in_specs=[vmem] * 8,
        out_specs=vmem,
    )(x2d, h0, pp['win'], pp['b_in'], pp['whh_e'], pp['whh_d'], pp['wfc'], pp['bfc'])

    # Kernel output rows are ordered t*Bp + b (time-major, lane-padded); restore (B,T,C).
    out = out.reshape(T_dec, Bp, LANE)[:, :B, :C]
    return jnp.transpose(out, (1, 0, 2))


# ----------------------------- pure-JAX reference -----------------------------
def _rnn_ref(x, h0, wih, whh, bih, bhh):
    h = h0
    outs = []
    for t in range(x.shape[1]):
        h = jnp.tanh(x[:, t, :] @ wih.T + bih + h @ whh.T + bhh)
        outs.append(h)
    return jnp.stack(outs, axis=1), h


def seq2seq_ref(enc_input, enc_hidden, dec_input, p):
    _, h = _rnn_ref(enc_input, enc_hidden[0],
                    p['wih_e'], p['whh_e'], p['bih_e'], p['bhh_e'])
    dec_out, _ = _rnn_ref(dec_input, h,
                          p['wih_d'], p['whh_d'], p['bih_d'], p['bhh_d'])
    return dec_out @ p['wfc'].T + p['bfc']


if __name__ == "__main__":
    # Small shapes consistent with the module's forward.
    n_class, n_hidden = 16, 32
    B, T_enc, T_dec = 2, 8, 8

    key = jax.random.PRNGKey(0)
    keys = jax.random.split(key, 16)
    k = 1.0 / jnp.sqrt(jnp.float32(n_hidden))        # PyTorch default init range

    def u(kk, shape):
        return jax.random.uniform(kk, shape, jnp.float32, -k, k)

    # Parameters in PyTorch layout: weight_ih (H, C), weight_hh (H, H), fc weight (C, H).
    params = dict(
        wih_e=u(keys[0], (n_hidden, n_class)), whh_e=u(keys[1], (n_hidden, n_hidden)),
        bih_e=u(keys[2], (n_hidden,)),         bhh_e=u(keys[3], (n_hidden,)),
        wih_d=u(keys[4], (n_hidden, n_class)), whh_d=u(keys[5], (n_hidden, n_hidden)),
        bih_d=u(keys[6], (n_hidden,)),         bhh_d=u(keys[7], (n_hidden,)),
        wfc=u(keys[8], (n_class, n_hidden)),   bfc=u(keys[9], (n_class,)),
    )

    enc_input = jax.random.normal(keys[10], (B, T_enc, n_class), jnp.float32)
    dec_input = jax.random.normal(keys[11], (B, T_dec, n_class), jnp.float32)
    enc_hidden = jax.random.normal(keys[12], (1, B, n_hidden), jnp.float32)

    prepped = prepare_params(params)                  # one-time, outside the jitted path
    fwd = jax.jit(seq2seq_forward)
    out = fwd(enc_input, enc_hidden, dec_input, prepped)
    out = jax.block_until_ready(out)

    ref = seq2seq_ref(enc_input, enc_hidden, dec_input, params)
    assert out.shape == (B, T_dec, n_class), out.shape
    assert jnp.allclose(out, ref, rtol=1e-5, atol=1e-4), float(jnp.max(jnp.abs(out - ref)))

    print("KERNEL_OK")
</pallas_src>

<mosaic_0001>
module attributes {stable_mosaic.version = 11 : i64} {
  func.func @seq2seq_kernel(%arg0: memref<128x16xf32, #tpu.memory_space<vmem>>, %arg1: memref<8x32xf32, #tpu.memory_space<vmem>>, %arg2: memref<16x64xf32, #tpu.memory_space<vmem>>, %arg3: memref<1x64xf32, #tpu.memory_space<vmem>>, %arg4: memref<32x32xf32, #tpu.memory_space<vmem>>, %arg5: memref<32x32xf32, #tpu.memory_space<vmem>>, %arg6: memref<32x128xf32, #tpu.memory_space<vmem>>, %arg7: memref<1x128xf32, #tpu.memory_space<vmem>>, %arg8: memref<64x128xf32, #tpu.memory_space<vmem>>) attributes {dimension_semantics = [], scalar_prefetch = 0 : i64, scratch_operands = 0 : i64, tpu.core_type = #tpu.core_type<tc>} {
    %c0 = arith.constant 0 : index
    %c0_0 = arith.constant 0 : index
    %0 = vector.load %arg0[%c0, %c0_0] : memref<128x16xf32, #tpu.memory_space<vmem>>, vector<128x16xf32>
    %c0_1 = arith.constant 0 : index
    %c0_2 = arith.constant 0 : index
    %1 = vector.load %arg2[%c0_1, %c0_2] : memref<16x64xf32, #tpu.memory_space<vmem>>, vector<16x64xf32>
    %cst = arith.constant dense<0.000000e+00> : vector<128x64xf32>
    %2 = tpu.matmul %0, %1, %cst {dimension_numbers = #tpu.dot_dimension_numbers<[1], [0], [0], [1], [0, 0, 1, 1], [], []>} : vector<128x16xf32>, vector<16x64xf32>, vector<128x64xf32> -> vector<128x64xf32>
    %c0_3 = arith.constant 0 : index
    %c0_4 = arith.constant 0 : index
    %3 = vector.load %arg3[%c0_3, %c0_4] : memref<1x64xf32, #tpu.memory_space<vmem>>, vector<1x64xf32>
    %4 = vector.broadcast %3 : vector<1x64xf32> to vector<128x64xf32>
    %5 = arith.addf %2, %4 : vector<128x64xf32>
    %6 = vector.extract_strided_slice %5 {offsets = [0, 0], sizes = [64, 32], strides = [1, 1]} : vector<128x64xf32> to vector<64x32xf32>
    %7 = vector.extract_strided_slice %5 {offsets = [64, 32], sizes = [64, 32], strides = [1, 1]} : vector<128x64xf32> to vector<64x32xf32>
    %c0_5 = arith.constant 0 : index
    %c0_6 = arith.constant 0 : index
    %8 = vector.load %arg4[%c0_5, %c0_6] : memref<32x32xf32, #tpu.memory_space<vmem>>, vector<32x32xf32>
    %c0_7 = arith.constant 0 : index
    %c0_8 = arith.constant 0 : index
    %9 = vector.load %arg5[%c0_7, %c0_8] : memref<32x32xf32, #tpu.memory_space<vmem>>, vector<32x32xf32>
    %c0_9 = arith.constant 0 : index
    %c0_10 = arith.constant 0 : index
    %10 = vector.load %arg1[%c0_9, %c0_10] : memref<8x32xf32, #tpu.memory_space<vmem>>, vector<8x32xf32>
    %11 = vector.extract_strided_slice %6 {offsets = [0, 0], sizes = [8, 32], strides = [1, 1]} : vector<64x32xf32> to vector<8x32xf32>
    %cst_11 = arith.constant dense<0.000000e+00> : vector<8x32xf32>
    %12 = tpu.matmul %10, %8, %cst_11 {dimension_numbers = #tpu.dot_dimension_numbers<[1], [0], [0], [1], [0, 0, 1, 1], [], []>} : vector<8x32xf32>, vector<32x32xf32>, vector<8x32xf32> -> vector<8x32xf32>
    %13 = arith.addf %11, %12 : vector<8x32xf32>
    %14 = math.tanh %13 : vector<8x32xf32>
    %15 = vector.extract_strided_slice %6 {offsets = [8, 0], sizes = [8, 32], strides = [1, 1]} : vector<64x32xf32> to vector<8x32xf32>
    %cst_12 = arith.constant dense<0.000000e+00> : vector<8x32xf32>
    %16 = tpu.matmul %14, %8, %cst_12 {dimension_numbers = #tpu.dot_dimension_numbers<[1], [0], [0], [1], [0, 0, 1, 1], [], []>} : vector<8x32xf32>, vector<32x32xf32>, vector<8x32xf32> -> vector<8x32xf32>
    %17 = arith.addf %15, %16 : vector<8x32xf32>
    %18 = math.tanh %17 : vector<8x32xf32>
    %19 = vector.extract_strided_slice %6 {offsets = [16, 0], sizes = [8, 32], strides = [1, 1]} : vector<64x32xf32> to vector<8x32xf32>
    %cst_13 = arith.constant dense<0.000000e+00> : vector<8x32xf32>
    %20 = tpu.matmul %18, %8, %cst_13 {dimension_numbers = #tpu.dot_dimension_numbers<[1], [0], [0], [1], [0, 0, 1, 1], [], []>} : vector<8x32xf32>, vector<32x32xf32>, vector<8x32xf32> -> vector<8x32xf32>
    %21 = arith.addf %19, %20 : vector<8x32xf32>
    %22 = math.tanh %21 : vector<8x32xf32>
    %23 = vector.extract_strided_slice %6 {offsets = [24, 0], sizes = [8, 32], strides = [1, 1]} : vector<64x32xf32> to vector<8x32xf32>
    %cst_14 = arith.constant dense<0.000000e+00> : vector<8x32xf32>
    %24 = tpu.matmul %22, %8, %cst_14 {dimension_numbers = #tpu.dot_dimension_numbers<[1], [0], [0], [1], [0, 0, 1, 1], [], []>} : vector<8x32xf32>, vector<32x32xf32>, vector<8x32xf32> -> vector<8x32xf32>
    %25 = arith.addf %23, %24 : vector<8x32xf32>
    %26 = math.tanh %25 : vector<8x32xf32>
    %27 = vector.extract_strided_slice %6 {offsets = [32, 0], sizes = [8, 32], strides = [1, 1]} : vector<64x32xf32> to vector<8x32xf32>
    %cst_15 = arith.constant dense<0.000000e+00> : vector<8x32xf32>
    %28 = tpu.matmul %26, %8, %cst_15 {dimension_numbers = #tpu.dot_dimension_numbers<[1], [0], [0], [1], [0, 0, 1, 1], [], []>} : vector<8x32xf32>, vector<32x32xf32>, vector<8x32xf32> -> vector<8x32xf32>
    %29 = arith.addf %27, %28 : vector<8x32xf32>
    %30 = math.tanh %29 : vector<8x32xf32>
    %31 = vector.extract_strided_slice %6 {offsets = [40, 0], sizes = [8, 32], strides = [1, 1]} : vector<64x32xf32> to vector<8x32xf32>
    %cst_16 = arith.constant dense<0.000000e+00> : vector<8x32xf32>
    %32 = tpu.matmul %30, %8, %cst_16 {dimension_numbers = #tpu.dot_dimension_numbers<[1], [0], [0], [1], [0, 0, 1, 1], [], []>} : vector<8x32xf32>, vector<32x32xf32>, vector<8x32xf32> -> vector<8x32xf32>
    %33 = arith.addf %31, %32 : vector<8x32xf32>
    %34 = math.tanh %33 : vector<8x32xf32>
    %35 = vector.extract_strided_slice %6 {offsets = [48, 0], sizes = [8, 32], strides = [1, 1]} : vector<64x32xf32> to vector<8x32xf32>
    %cst_17 = arith.constant dense<0.000000e+00> : vector<8x32xf32>
    %36 = tpu.matmul %34, %8, %cst_17 {dimension_numbers = #tpu.dot_dimension_numbers<[1], [0], [0], [1], [0, 0, 1, 1], [], []>} : vector<8x32xf32>, vector<32x32xf32>, vector<8x32xf32> -> vector<8x32xf32>
    %37 = arith.addf %35, %36 : vector<8x32xf32>
    %38 = math.tanh %37 : vector<8x32xf32>
    %39 = vector.extract_strided_slice %6 {offsets = [56, 0], sizes = [8, 32], strides = [1, 1]} : vector<64x32xf32> to vector<8x32xf32>
    %cst_18 = arith.constant dense<0.000000e+00> : vector<8x32xf32>
    %40 = tpu.matmul %38, %8, %cst_18 {dimension_numbers = #tpu.dot_dimension_numbers<[1], [0], [0], [1], [0, 0, 1, 1], [], []>} : vector<8x32xf32>, vector<32x32xf32>, vector<8x32xf32> -> vector<8x32xf32>
    %41 = arith.addf %39, %40 : vector<8x32xf32>
    %42 = math.tanh %41 : vector<8x32xf32>
    %43 = vector.extract_strided_slice %7 {offsets = [0, 0], sizes = [8, 32], strides = [1, 1]} : vector<64x32xf32> to vector<8x32xf32>
    %cst_19 = arith.constant dense<0.000000e+00> : vector<8x32xf32>
    %44 = tpu.matmul %42, %9, %cst_19 {dimension_numbers = #tpu.dot_dimension_numbers<[1], [0], [0], [1], [0, 0, 1, 1], [], []>} : vector<8x32xf32>, vector<32x32xf32>, vector<8x32xf32> -> vector<8x32xf32>
    %45 = arith.addf %43, %44 : vector<8x32xf32>
    %46 = math.tanh %45 : vector<8x32xf32>
    %47 = vector.extract_strided_slice %7 {offsets = [8, 0], sizes = [8, 32], strides = [1, 1]} : vector<64x32xf32> to vector<8x32xf32>
    %cst_20 = arith.constant dense<0.000000e+00> : vector<8x32xf32>
    %48 = tpu.matmul %46, %9, %cst_20 {dimension_numbers = #tpu.dot_dimension_numbers<[1], [0], [0], [1], [0, 0, 1, 1], [], []>} : vector<8x32xf32>, vector<32x32xf32>, vector<8x32xf32> -> vector<8x32xf32>
    %49 = arith.addf %47, %48 : vector<8x32xf32>
    %50 = math.tanh %49 : vector<8x32xf32>
    %51 = vector.extract_strided_slice %7 {offsets = [16, 0], sizes = [8, 32], strides = [1, 1]} : vector<64x32xf32> to vector<8x32xf32>
    %cst_21 = arith.constant dense<0.000000e+00> : vector<8x32xf32>
    %52 = tpu.matmul %50, %9, %cst_21 {dimension_numbers = #tpu.dot_dimension_numbers<[1], [0], [0], [1], [0, 0, 1, 1], [], []>} : vector<8x32xf32>, vector<32x32xf32>, vector<8x32xf32> -> vector<8x32xf32>
    %53 = arith.addf %51, %52 : vector<8x32xf32>
    %54 = math.tanh %53 : vector<8x32xf32>
    %55 = vector.extract_strided_slice %7 {offsets = [24, 0], sizes = [8, 32], strides = [1, 1]} : vector<64x32xf32> to vector<8x32xf32>
    %cst_22 = arith.constant dense<0.000000e+00> : vector<8x32xf32>
    %56 = tpu.matmul %54, %9, %cst_22 {dimension_numbers = #tpu.dot_dimension_numbers<[1], [0], [0], [1], [0, 0, 1, 1], [], []>} : vector<8x32xf32>, vector<32x32xf32>, vector<8x32xf32> -> vector<8x32xf32>
    %57 = arith.addf %55, %56 : vector<8x32xf32>
    %58 = math.tanh %57 : vector<8x32xf32>
    %59 = vector.extract_strided_slice %7 {offsets = [32, 0], sizes = [8, 32], strides = [1, 1]} : vector<64x32xf32> to vector<8x32xf32>
    %cst_23 = arith.constant dense<0.000000e+00> : vector<8x32xf32>
    %60 = tpu.matmul %58, %9, %cst_23 {dimension_numbers = #tpu.dot_dimension_numbers<[1], [0], [0], [1], [0, 0, 1, 1], [], []>} : vector<8x32xf32>, vector<32x32xf32>, vector<8x32xf32> -> vector<8x32xf32>
    %61 = arith.addf %59, %60 : vector<8x32xf32>
    %62 = math.tanh %61 : vector<8x32xf32>
    %63 = vector.extract_strided_slice %7 {offsets = [40, 0], sizes = [8, 32], strides = [1, 1]} : vector<64x32xf32> to vector<8x32xf32>
    %cst_24 = arith.constant dense<0.000000e+00> : vector<8x32xf32>
    %64 = tpu.matmul %62, %9, %cst_24 {dimension_numbers = #tpu.dot_dimension_numbers<[1], [0], [0], [1], [0, 0, 1, 1], [], []>} : vector<8x32xf32>, vector<32x32xf32>, vector<8x32xf32> -> vector<8x32xf32>
    %65 = arith.addf %63, %64 : vector<8x32xf32>
    %66 = math.tanh %65 : vector<8x32xf32>
    %67 = vector.extract_strided_slice %7 {offsets = [48, 0], sizes = [8, 32], strides = [1, 1]} : vector<64x32xf32> to vector<8x32xf32>
    %cst_25 = arith.constant dense<0.000000e+00> : vector<8x32xf32>
    %68 = tpu.matmul %66, %9, %cst_25 {dimension_numbers = #tpu.dot_dimension_numbers<[1], [0], [0], [1], [0, 0, 1, 1], [], []>} : vector<8x32xf32>, vector<32x32xf32>, vector<8x32xf32> -> vector<8x32xf32>
    %69 = arith.addf %67, %68 : vector<8x32xf32>
    %70 = math.tanh %69 : vector<8x32xf32>
    %71 = vector.extract_strided_slice %7 {offsets = [56, 0], sizes = [8, 32], strides = [1, 1]} : vector<64x32xf32> to vector<8x32xf32>
    %cst_26 = arith.constant dense<0.000000e+00> : vector<8x32xf32>
    %72 = tpu.matmul %70, %9, %cst_26 {dimension_numbers = #tpu.dot_dimension_numbers<[1], [0], [0], [1], [0, 0, 1, 1], [], []>} : vector<8x32xf32>, vector<32x32xf32>, vector<8x32xf32> -> vector<8x32xf32>
    %73 = arith.addf %71, %72 : vector<8x32xf32>
    %74 = math.tanh %73 : vector<8x32xf32>
    %75 = tpu.concatenate %46, %50, %54, %58, %62, %66, %70, %74 in 0 : vector<8x32xf32>, vector<8x32xf32>, vector<8x32xf32>, vector<8x32xf32>, vector<8x32xf32>, vector<8x32xf32>, vector<8x32xf32>, vector<8x32xf32> -> vector<64x32xf32>
    %c0_27 = arith.constant 0 : index
    %c0_28 = arith.constant 0 : index
    %76 = vector.load %arg6[%c0_27, %c0_28] : memref<32x128xf32, #tpu.memory_space<vmem>>, vector<32x128xf32>
    %cst_29 = arith.constant dense<0.000000e+00> : vector<64x128xf32>
    %77 = tpu.matmul %75, %76, %cst_29 {dimension_numbers = #tpu.dot_dimension_numbers<[1], [0], [0], [1], [0, 0, 1, 1], [], []>} : vector<64x32xf32>, vector<32x128xf32>, vector<64x128xf32> -> vector<64x128xf32>
    %c0_30 = arith.constant 0 : index
    %c0_31 = arith.constant 0 : index
    %78 = vector.load %arg7[%c0_30, %c0_31] : memref<1x128xf32, #tpu.memory_space<vmem>>, vector<1x128xf32>
    %79 = vector.broadcast %78 : vector<1x128xf32> to vector<64x128xf32>
    %80 = arith.addf %77, %79 : vector<64x128xf32>
    %c0_32 = arith.constant 0 : index
    %c0_33 = arith.constant 0 : index
    %81 = vector.load %arg8[%c0_32, %c0_33] : memref<64x128xf32, #tpu.memory_space<vmem>>, vector<64x128xf32>
    tpu.vector_store %arg8[%c0_32, %c0_33], %80 {strides = array<i32>} : memref<64x128xf32, #tpu.memory_space<vmem>>, vector<64x128xf32>,
    return
  }
}

</mosaic_0001>

<llo_original>
// kernel: seq2seq_forward.1
$region0: #{seq2seq_forward.1}
  #allocation0 [shape = 'u32[]', space=smem, size = 0x4, offset = 0x4, fixed_abs, tag = 'smem constant byte address 0x4 - core index']
  #allocation1 [shape = 'u32[144,128]{1,0:T(1,128)}', space=vmem, size = 0x12000, scoped, tag = 'internal scratch']
  %s0 = inlined_call_operand.vmem [shape: f32[128,16], index: 0, kind: input, shape index: {}]
  %s1 = inlined_call_operand.vmem [shape: f32[8,32], index: 1, kind: input, shape index: {}]
  %s2 = inlined_call_operand.vmem [shape: f32[16,64], index: 2, kind: input, shape index: {}]
  %s3 = inlined_call_operand.vmem [shape: f32[1,64], index: 3, kind: input, shape index: {}]
  %s4 = inlined_call_operand.vmem [shape: f32[32,32], index: 4, kind: input, shape index: {}]
  %s5 = inlined_call_operand.vmem [shape: f32[32,32], index: 5, kind: input, shape index: {}]
  %s6 = inlined_call_operand.vmem [shape: f32[32,128], index: 6, kind: input, shape index: {}]
  %s7 = inlined_call_operand.vmem [shape: f32[1,128], index: 7, kind: input, shape index: {}]
  %s8 = inlined_call_operand.vmem [shape: f32[64,128], index: 8, kind: output, shape index: {}]
  %s9 = sld [smem:[#allocation0]]
  $region42: #{seq2seq_forward.1} parent=0
    _
  %s11 = ssub.s32 1, %s9
  %s12 = scalar_select 0, %s11, %s9
  // Predicated region
  $region2: #{seq2seq_forward.1} parent=0 // pred_check
    _
  $region3: #{seq2seq_forward.1} parent=0 // pred_check_branch
    %14 = sbr.rel (0) target = $region5
  $region4: #{seq2seq_forward.1} parent=0 // pred_region
    _
  $region5: #{seq2seq_forward.1} parent=0 // pred_fallthru
    _
  // Predicated region
  $region6: #{seq2seq_forward.1} parent=0 // pred_check
    _
  $region7: #{seq2seq_forward.1} parent=0 // pred_check_branch
    %16 = sbr.rel (0) target = $region9
  $region8: #{seq2seq_forward.1} parent=0 // pred_region
    _
  $region9: #{seq2seq_forward.1} parent=0 // pred_fallthru
    _
  // Predicated region
  $region10: #{seq2seq_forward.1} parent=0 // pred_check
    _
  $region11: #{seq2seq_forward.1} parent=0 // pred_check_branch
    %18 = sbr.rel (0) target = $region13
  $region12: #{seq2seq_forward.1} parent=0 // pred_region
    _
  $region13: #{seq2seq_forward.1} parent=0 // pred_fallthru
    _
  // Predicated region
  $region14: #{seq2seq_forward.1} parent=0 // pred_check
    _
  $region15: #{seq2seq_forward.1} parent=0 // pred_check_branch
    %20 = sbr.rel (0) target = $region17
  $region16: #{seq2seq_forward.1} parent=0 // pred_region
    _
  $region17: #{seq2seq_forward.1} parent=0 // pred_fallthru
    _
  // Predicated region
  $region18: #{seq2seq_forward.1} parent=0 // pred_check
    _
  $region19: #{seq2seq_forward.1} parent=0 // pred_check_branch
    %22 = sbr.rel (0) target = $region21
  $region20: #{seq2seq_forward.1} parent=0 // pred_region
    _
  $region21: #{seq2seq_forward.1} parent=0 // pred_fallthru
    _
  // Predicated region
  $region22: #{seq2seq_forward.1} parent=0 // pred_check
    _
  $region23: #{seq2seq_forward.1} parent=0 // pred_check_branch
    %24 = sbr.rel (0) target = $region25
  $region24: #{seq2seq_forward.1} parent=0 // pred_region
    _
  $region25: #{seq2seq_forward.1} parent=0 // pred_fallthru
    _
  // Predicated region
  $region26: #{seq2seq_forward.1} parent=0 // pred_check
    _
  $region27: #{seq2seq_forward.1} parent=0 // pred_check_branch
    %26 = sbr.rel (0) target = $region29
  $region28: #{seq2seq_forward.1} parent=0 // pred_region
    _
  $region29: #{seq2seq_forward.1} parent=0 // pred_fallthru
    _
  // Predicated region
  $region30: #{seq2seq_forward.1} parent=0 // pred_check
    _
  $region31: #{seq2seq_forward.1} parent=0 // pred_check_branch
    %28 = sbr.rel (0) target = $region33
  $region32: #{seq2seq_forward.1} parent=0 // pred_region
    _
  $region33: #{seq2seq_forward.1} parent=0 // pred_fallthru
    _
  %v29 = vld [vmem:[%s0] sm:$0xff]
  %v30 = vld [vmem:[%s0 + $0x8] sm:$0xff]
  %v31 = vld [vmem:[%s0 + $0x10] sm:$0xff]
  %v32 = vld [vmem:[%s0 + $0x18] sm:$0xff]
  %v33 = vld [vmem:[%s0 + $0x20] sm:$0xff]
  %v34 = vld [vmem:[%s0 + $0x28] sm:$0xff]
  %v35 = vld [vmem:[%s0 + $0x30] sm:$0xff]
  %v36 = vld [vmem:[%s0 + $0x38] sm:$0xff]
  %v37 = vld [vmem:[%s0 + $0x40] sm:$0xff]
  %v38 = vld [vmem:[%s0 + $0x48] sm:$0xff]
  %v39 = vld [vmem:[%s0 + $0x50] sm:$0xff]
  %v40 = vld [vmem:[%s0 + $0x58] sm:$0xff]
  %v41 = vld [vmem:[%s0 + $0x60] sm:$0xff]
  %v42 = vld [vmem:[%s0 + $0x68] sm:$0xff]
  %v43 = vld [vmem:[%s0 + $0x70] sm:$0xff]
  %v44 = vld [vmem:[%s0 + $0x78] sm:$0xff]
  %v45 = vld [vmem:[%s2] sm:$0xff]
  %v46 = vld [vmem:[%s2 + $0x8] sm:$0xff]
  %v47 = vld [vmem:[%s3] sm:$0x1]
  %v49 = vlaneseq
  %v50 = vshrl.u32 %v49, 7
  %v51 = vsub.s32 0, %v50
  %v52 = vrot.slane %v47, %v51
  %vm54 = vcmask 130048
  %v56 = vsel %vm54, %v29, 0
  %v59 = vsel %vm54, %v30, 0
  %v62 = vsel %vm54, %v31, 0
  %v65 = vsel %vm54, %v32, 0
  %v68 = vsel %vm54, %v33, 0
  %v71 = vsel %vm54, %v34, 0
  %v74 = vsel %vm54, %v35, 0
  %v77 = vsel %vm54, %v36, 0
  %v80 = vsel %vm54, %v37, 0
  %v83 = vsel %vm54, %v38, 0
  %v86 = vsel %vm54, %v39, 0
  %v89 = vsel %vm54, %v40, 0
  %v92 = vsel %vm54, %v41, 0
  %v95 = vsel %vm54, %v42, 0
  %v98 = vsel %vm54, %v43, 0
  %v101 = vsel %vm54, %v44, 0
  %103 = vmatprep.subr.mxu0 0.0
  %104 = vmatpush1.msra.mxu0 %v45
  %105 = vmatprep.subr.mxu0 0.0
  %106 = vmatpush1.msra.mxu0 %v46
  %107 = vmatprep.subr.mxu0 0.0
  %108 = vmatpush1.msra.mxu0 0.0
  %109 = vmatprep.subr.mxu0 0.0
  %110 = vmatpush1.msra.mxu0 0.0
  %111 = vmatprep.subr.mxu0 0.0
  %112 = vmatpush1.msra.mxu0 0.0
  %113 = vmatprep.subr.mxu0 0.0
  %114 = vmatpush1.msra.mxu0 0.0
  %115 = vmatprep.subr.mxu0 0.0
  %116 = vmatpush1.msra.mxu0 0.0
  %117 = vmatprep.subr.mxu0 0.0
  %118 = vmatpush1.msra.mxu0 0.0
  %119 = vmatprep.subr.mxu0 0.0
  %120 = vmatpush1.msra.mxu0 0.0
  %121 = vmatprep.subr.mxu0 0.0
  %122 = vmatpush1.msra.mxu0 0.0
  %123 = vmatprep.subr.mxu0 0.0
  %124 = vmatpush1.msra.mxu0 0.0
  %125 = vmatprep.subr.mxu0 0.0
  %126 = vmatpush1.msra.mxu0 0.0
  %127 = vmatprep.subr.mxu0 0.0
  %128 = vmatpush1.msra.mxu0 0.0
  %129 = vmatprep.subr.mxu0 0.0
  %130 = vmatpush1.msra.mxu0 0.0
  %131 = vmatprep.subr.mxu0 0.0
  %132 = vmatpush1.msra.mxu0 0.0
  %133 = vmatprep.subr.mxu0 0.0
  %134 = vmatpush1.msra.mxu0 0.0
  %135 = vmatprep.subr.mxu0 0.0
  %136 = vmatpush1.msra.mxu0 0.0
  %137 = vmatprep.subr.mxu0 0.0
  %138 = vmatpush1.msra.mxu0 0.0
  %139 = vmatprep.subr.mxu0 0.0
  %140 = vmatpush1.msra.mxu0 0.0
  %141 = vmatprep.subr.mxu0 0.0
  %142 = vmatpush1.msra.mxu0 0.0
  %143 = vmatprep.subr.mxu0 0.0
  %144 = vmatpush1.msra.mxu0 0.0
  %145 = vmatprep.subr.mxu0 0.0
  %146 = vmatpush1.msra.mxu0 0.0
  %147 = vmatprep.subr.mxu0 0.0
  %148 = vmatpush1.msra.mxu0 0.0
  %149 = vmatprep.subr.mxu0 0.0
  %150 = vmatpush1.msra.mxu0 0.0
  %151 = vmatprep.subr.mxu0 0.0
  %152 = vmatpush1.msra.mxu0 0.0
  %153 = vmatprep.subr.mxu0 0.0
  %154 = vmatpush1.msra.mxu0 0.0
  %155 = vmatprep.subr.mxu0 0.0
  %156 = vmatpush1.msra.mxu0 0.0
  %157 = vmatprep.subr.mxu0 0.0
  %158 = vmatpush1.msra.mxu0 0.0
  %159 = vmatprep.subr.mxu0 0.0
  %160 = vmatpush1.msra.mxu0 0.0
  %161 = vmatprep.subr.mxu0 0.0
  %162 = vmatpush1.msra.mxu0 0.0
  %163 = vmatprep.subr.mxu0 0.0
  %164 = vmatpush1.msra.mxu0 0.0
  %165 = vmatprep.subr.mxu0 0.0
  %166 = vmatpush1.msra.mxu0 0.0
  %167 = vmatprep.mubr.f32.mxu0 0.0
  %168 = vmatmul.mubr.f32.gmra.mrb[0].mxu0 %v56
  %v169 = vpop.f32.mrb[0].mxu0
  %v170 = vadd.f32 %v52, %v169
  %v171 = vpop.f32.mrb[0].mxu0
  %172 = vmatprep.mubr.f32.mxu0 0.0
  %173 = vmatmul.mubr.f32.gmra.mrb[0].mxu0 %v59
  %v174 = vpop.f32.mrb[0].mxu0
  %v175 = vadd.f32 %v52, %v174
  %v176 = vpop.f32.mrb[0].mxu0
  %177 = vmatprep.mubr.f32.mxu0 0.0
  %178 = vmatmul.mubr.f32.gmra.mrb[0].mxu0 %v62
  %v179 = vpop.f32.mrb[0].mxu0
  %v180 = vadd.f32 %v52, %v179
  %v181 = vpop.f32.mrb[0].mxu0
  %182 = vmatprep.mubr.f32.mxu0 0.0
  %183 = vmatmul.mubr.f32.gmra.mrb[0].mxu0 %v65
  %v184 = vpop.f32.mrb[0].mxu0
  %v185 = vadd.f32 %v52, %v184
  %v186 = vpop.f32.mrb[0].mxu0
  %187 = vmatprep.mubr.f32.mxu0 0.0
  %188 = vmatmul.mubr.f32.gmra.mrb[0].mxu0 %v68
  %v189 = vpop.f32.mrb[0].mxu0
  %v190 = vadd.f32 %v52, %v189
  %v191 = vpop.f32.mrb[0].mxu0
  %192 = vmatprep.mubr.f32.mxu0 0.0
  %193 = vmatmul.mubr.f32.gmra.mrb[0].mxu0 %v71
  %v194 = vpop.f32.mrb[0].mxu0
  %v195 = vadd.f32 %v52, %v194
  %v196 = vpop.f32.mrb[0].mxu0
  %197 = vmatprep.mubr.f32.mxu0 0.0
  %198 = vmatmul.mubr.f32.gmra.mrb[0].mxu0 %v74
  %v199 = vpop.f32.mrb[0].mxu0
  %v200 = vadd.f32 %v52, %v199
  %v201 = vpop.f32.mrb[0].mxu0
  %202 = vmatprep.mubr.f32.mxu0 0.0
  %203 = vmatmul.mubr.f32.gmra.mrb[0].mxu0 %v77
  %v204 = vpop.f32.mrb[0].mxu0
  %v205 = vadd.f32 %v52, %v204
  %v206 = vpop.f32.mrb[0].mxu0
  %207 = vmatprep.mubr.f32.mxu0 0.0
  %208 = vmatmul.mubr.f32.gmra.mrb[0].mxu0 %v80
  %v209 = vpop.f32.mrb[0].mxu0
  %v210 = vadd.f32 %v52, %v209
  %v211 = vpop.f32.mrb[0].mxu0
  %212 = vmatprep.mubr.f32.mxu0 0.0
  %213 = vmatmul.mubr.f32.gmra.mrb[0].mxu0 %v83
  %v214 = vpop.f32.mrb[0].mxu0
  %v215 = vadd.f32 %v52, %v214
  %v216 = vpop.f32.mrb[0].mxu0
  %217 = vmatprep.mubr.f32.mxu0 0.0
  %218 = vmatmul.mubr.f32.gmra.mrb[0].mxu0 %v86
  %v219 = vpop.f32.mrb[0].mxu0
  %v220 = vadd.f32 %v52, %v219
  %v221 = vpop.f32.mrb[0].mxu0
  %222 = vmatprep.mubr.f32.mxu0 0.0
  %223 = vmatmul.mubr.f32.gmra.mrb[0].mxu0 %v89
  %v224 = vpop.f32.mrb[0].mxu0
  %v225 = vadd.f32 %v52, %v224
  %v226 = vpop.f32.mrb[0].mxu0
  %227 = vmatprep.mubr.f32.mxu0 0.0
  %228 = vmatmul.mubr.f32.gmra.mrb[0].mxu0 %v92
  %v229 = vpop.f32.mrb[0].mxu0
  %v230 = vadd.f32 %v52, %v229
  %v231 = vpop.f32.mrb[0].mxu0
  %232 = vmatprep.mubr.f32.mxu0 0.0
  %233 = vmatmul.mubr.f32.gmra.mrb[0].mxu0 %v95
  %v234 = vpop.f32.mrb[0].mxu0
  %v235 = vadd.f32 %v52, %v234
  %v236 = vpop.f32.mrb[0].mxu0
  %237 = vmatprep.mubr.f32.mxu0 0.0
  %238 = vmatmul.mubr.f32.gmra.mrb[0].mxu0 %v98
  %v239 = vpop.f32.mrb[0].mxu0
  %v240 = vadd.f32 %v52, %v239
  %v241 = vpop.f32.mrb[0].mxu0
  %242 = vmatprep.mubr.f32.mxu0 0.0
  %243 = vmatmul.mubr.f32.gmra.mrb[0].mxu0 %v101
  %v244 = vpop.f32.mrb[0].mxu0
  %v245 = vadd.f32 %v52, %v244
  %v246 = vpop.f32.mrb[0].mxu0
  %247 = vdwg.mxu0
  %v248 = vld [vmem:[%s4] sm:$0xff]
  %v249 = vld [vmem:[%s4 + $0x8] sm:$0xff]
  %v250 = vld [vmem:[%s4 + $0x10] sm:$0xff]
  %v251 = vld [vmem:[%s4 + $0x18] sm:$0xff]
  %v252 = vld [vmem:[%s5] sm:$0xff]
  %v253 = vld [vmem:[%s5 + $0x8] sm:$0xff]
  %v254 = vld [vmem:[%s5 + $0x10] sm:$0xff]
  %v255 = vld [vmem:[%s5 + $0x18] sm:$0xff]
  %v256 = vld [vmem:[%s1] sm:$0xff]
  %vm257 = vcmask 261120
  %v259 = vsel %vm257, %v256, 0
  %261 = vmatprep.subr.mxu0 0.0
  %262 = vmatpush1.msra.mxu0 %v248
  %263 = vmatprep.subr.mxu0 0.0
  %264 = vmatpush1.msra.mxu0 %v249
  %265 = vmatprep.subr.mxu0 0.0
  %266 = vmatpush1.msra.mxu0 %v250
  %267 = vmatprep.subr.mxu0 0.0
  %268 = vmatpush1.msra.mxu0 %v251
  %269 = vmatprep.subr.mxu0 0.0
  %270 = vmatpush1.msra.mxu0 0.0
  %271 = vmatprep.subr.mxu0 0.0
  %272 = vmatpush1.msra.mxu0 0.0
  %273 = vmatprep.subr.mxu0 0.0
  %274 = vmatpush1.msra.mxu0 0.0
  %275 = vmatprep.subr.mxu0 0.0
  %276 = vmatpush1.msra.mxu0 0.0
  %277 = vmatprep.subr.mxu0 0.0
  %278 = vmatpush1.msra.mxu0 0.0
  %279 = vmatprep.subr.mxu0 0.0
  %280 = vmatpush1.msra.mxu0 0.0
  %281 = vmatprep.subr.mxu0 0.0
  %282 = vmatpush1.msra.mxu0 0.0
  %283 = vmatprep.subr.mxu0 0.0
  %284 = vmatpush1.msra.mxu0 0.0
  %285 = vmatprep.subr.mxu0 0.0
  %286 = vmatpush1.msra.mxu0 0.0
  %287 = vmatprep.subr.mxu0 0.0
  %288 = vmatpush1.msra.mxu0 0.0
  %289 = vmatprep.subr.mxu0 0.0
  %290 = vmatpush1.msra.mxu0 0.0
  %291 = vmatprep.subr.mxu0 0.0
  %292 = vmatpush1.msra.mxu0 0.0
  %293 = vmatprep.subr.mxu0 0.0
  %294 = vmatpush1.msra.mxu0 0.0
  %295 = vmatprep.subr.mxu0 0.0
  %296 = vmatpush1.msra.mxu0 0.0
  %297 = vmatprep.subr.mxu0 0.0
  %298 = vmatpush1.msra.mxu0 0.0
  %299 = vmatprep.subr.mxu0 0.0
  %300 = vmatpush1.msra.mxu0 0.0
  %301 = vmatprep.subr.mxu0 0.0
  %302 = vmatpush1.msra.mxu0 0.0
  %303 = vmatprep.subr.mxu0 0.0
  %304 = vmatpush1.msra.mxu0 0.0
  %305 = vmatprep.subr.mxu0 0.0
  %306 = vmatpush1.msra.mxu0 0.0
  %307 = vmatprep.subr.mxu0 0.0
  %308 = vmatpush1.msra.mxu0 0.0
  %309 = vmatprep.subr.mxu0 0.0
  %310 = vmatpush1.msra.mxu0 0.0
  %311 = vmatprep.subr.mxu0 0.0
  %312 = vmatpush1.msra.mxu0 0.0
  %313 = vmatprep.subr.mxu0 0.0
  %314 = vmatpush1.msra.mxu0 0.0
  %315 = vmatprep.subr.mxu0 0.0
  %316 = vmatpush1.msra.mxu0 0.0
  %317 = vmatprep.subr.mxu0 0.0
  %318 = vmatpush1.msra.mxu0 0.0
  %319 = vmatprep.subr.mxu0 0.0
  %320 = vmatpush1.msra.mxu0 0.0
  %321 = vmatprep.subr.mxu0 0.0
  %322 = vmatpush1.msra.mxu0 0.0
  %323 = vmatprep.subr.mxu0 0.0
  %324 = vmatpush1.msra.mxu0 0.0
  %325 = vmatprep.mubr.f32.mxu0 0.0
  %326 = vmatmul.mubr.f32.gmra.mrb[0].mxu0 %v259
  %v327 = vpop.f32.mrb[0].mxu0
  %v328 = vadd.f32 0.0, %v327
  %v329 = vpop.f32.mrb[0].mxu0
  %330 = vdwg.mxu0
  %v331 = vadd.f32 %v170, %v328
  %v332 = vtanh.pop %v331
  %v334 = vsel %vm257, %v332, 0
  %336 = vmatprep.subr.mxu0 0.0
  %337 = vmatpush1.msra.mxu0 %v248
  %338 = vmatprep.subr.mxu0 0.0
  %339 = vmatpush1.msra.mxu0 %v249
  %340 = vmatprep.subr.mxu0 0.0
  %341 = vmatpush1.msra.mxu0 %v250
  %342 = vmatprep.subr.mxu0 0.0
  %343 = vmatpush1.msra.mxu0 %v251
  %344 = vmatprep.subr.mxu0 0.0
  %345 = vmatpush1.msra.mxu0 0.0
  %346 = vmatprep.subr.mxu0 0.0
  %347 = vmatpush1.msra.mxu0 0.0
  %348 = vmatprep.subr.mxu0 0.0
  %349 = vmatpush1.msra.mxu0 0.0
  %350 = vmatprep.subr.mxu0 0.0
  %351 = vmatpush1.msra.mxu0 0.0
  %352 = vmatprep.subr.mxu0 0.0
  %353 = vmatpush1.msra.mxu0 0.0
  %354 = vmatprep.subr.mxu0 0.0
  %355 = vmatpush1.msra.mxu0 0.0
  %356 = vmatprep.subr.mxu0 0.0
  %357 = vmatpush1.msra.mxu0 0.0
  %358 = vmatprep.subr.mxu0 0.0
  %359 = vmatpush1.msra.mxu0 0.0
  %360 = vmatprep.subr.mxu0 0.0
  %361 = vmatpush1.msra.mxu0 0.0
  %362 = vmatprep.subr.mxu0 0.0
  %363 = vmatpush1.msra.mxu0 0.0
  %364 = vmatprep.subr.mxu0 0.0
  %365 = vmatpush1.msra.mxu0 0.0
  %366 = vmatprep.subr.mxu0 0.0
  %367 = vmatpush1.msra.mxu0 0.0
  %368 = vmatprep.subr.mxu0 0.0
  %369 = vmatpush1.msra.mxu0 0.0
  %370 = vmatprep.subr.mxu0 0.0
  %371 = vmatpush1.msra.mxu0 0.0
  %372 = vmatprep.subr.mxu0 0.0
  %373 = vmatpush1.msra.mxu0 0.0
  %374 = vmatprep.subr.mxu0 0.0
  %375 = vmatpush1.msra.mxu0 0.0
  %376 = vmatprep.subr.mxu0 0.0
  %377 = vmatpush1.msra.mxu0 0.0
  %378 = vmatprep.subr.mxu0 0.0
  %379 = vmatpush1.msra.mxu0 0.0
  %380 = vmatprep.subr.mxu0 0.0
  %381 = vmatpush1.msra.mxu0 0.0
  %382 = vmatprep.subr.mxu0 0.0
  %383 = vmatpush1.msra.mxu0 0.0
  %384 = vmatprep.subr.mxu0 0.0
  %385 = vmatpush1.msra.mxu0 0.0
  %386 = vmatprep.subr.mxu0 0.0
  %387 = vmatpush1.msra.mxu0 0.0
  %388 = vmatprep.subr.mxu0 0.0
  %389 = vmatpush1.msra.mxu0 0.0
  %390 = vmatprep.subr.mxu0 0.0
  %391 = vmatpush1.msra.mxu0 0.0
  %392 = vmatprep.subr.mxu0 0.0
  %393 = vmatpush1.msra.mxu0 0.0
  %394 = vmatprep.subr.mxu0 0.0
  %395 = vmatpush1.msra.mxu0 0.0
  %396 = vmatprep.subr.mxu0 0.0
  %397 = vmatpush1.msra.mxu0 0.0
  %398 = vmatprep.subr.mxu0 0.0
  %399 = vmatpush1.msra.mxu0 0.0
  %400 = vmatprep.mubr.f32.mxu0 0.0
  %401 = vmatmul.mubr.f32.gmra.mrb[0].mxu0 %v334
  %v402 = vpop.f32.mrb[0].mxu0
  %v403 = vadd.f32 0.0, %v402
  %v404 = vpop.f32.mrb[0].mxu0
  %405 = vdwg.mxu0
  %v406 = vadd.f32 %v175, %v403
  %v407 = vtanh.pop %v406
  %v409 = vsel %vm257, %v407, 0
  %411 = vmatprep.subr.mxu0 0.0
  %412 = vmatpush1.msra.mxu0 %v248
  %413 = vmatprep.subr.mxu0 0.0
  %414 = vmatpush1.msra.mxu0 %v249
  %415 = vmatprep.subr.mxu0 0.0
  %416 = vmatpush1.msra.mxu0 %v250
  %417 = vmatprep.subr.mxu0 0.0
  %418 = vmatpush1.msra.mxu0 %v251
  %419 = vmatprep.subr.mxu0 0.0
  %420 = vmatpush1.msra.mxu0 0.0
  %421 = vmatprep.subr.mxu0 0.0
  %422 = vmatpush1.msra.mxu0 0.0
  %423 = vmatprep.subr.mxu0 0.0
  %424 = vmatpush1.msra.mxu0 0.0
  %425 = vmatprep.subr.mxu0 0.0
  %426 = vmatpush1.msra.mxu0 0.0
  %427 = vmatprep.subr.mxu0 0.0
  %428 = vmatpush1.msra.mxu0 0.0
  %429 = vmatprep.subr.mxu0 0.0
  %430 = vmatpush1.msra.mxu0 0.0
  %431 = vmatprep.subr.mxu0 0.0
  %432 = vmatpush1.msra.mxu0 0.0
  %433 = vmatprep.subr.mxu0 0.0
  %434 = vmatpush1.msra.mxu0 0.0
  %435 = vmatprep.subr.mxu0 0.0
  %436 = vmatpush1.msra.mxu0 0.0
  %437 = vmatprep.subr.mxu0 0.0
  %438 = vmatpush1.msra.mxu0 0.0
  %439 = vmatprep.subr.mxu0 0.0
  %440 = vmatpush1.msra.mxu0 0.0
  %441 = vmatprep.subr.mxu0 0.0
  %442 = vmatpush1.msra.mxu0 0.0
  %443 = vmatprep.subr.mxu0 0.0
  %444 = vmatpush1.msra.mxu0 0.0
  %445 = vmatprep.subr.mxu0 0.0
  %446 = vmatpush1.msra.mxu0 0.0
  %447 = vmatprep.subr.mxu0 0.0
  %448 = vmatpush1.msra.mxu0 0.0
  %449 = vmatprep.subr.mxu0 0.0
  %450 = vmatpush1.msra.mxu0 0.0
  %451 = vmatprep.subr.mxu0 0.0
  %452 = vmatpush1.msra.mxu0 0.0
  %453 = vmatprep.subr.mxu0 0.0
  %454 = vmatpush1.msra.mxu0 0.0
  %455 = vmatprep.subr.mxu0 0.0
  %456 = vmatpush1.msra.mxu0 0.0
  %457 = vmatprep.subr.mxu0 0.0
  %458 = vmatpush1.msra.mxu0 0.0
  %459 = vmatprep.subr.mxu0 0.0
  %460 = vmatpush1.msra.mxu0 0.0
  %461 = vmatprep.subr.mxu0 0.0
  %462 = vmatpush1.msra.mxu0 0.0
  %463 = vmatprep.subr.mxu0 0.0
  %464 = vmatpush1.msra.mxu0 0.0
  %465 = vmatprep.subr.mxu0 0.0
  %466 = vmatpush1.msra.mxu0 0.0
  %467 = vmatprep.subr.mxu0 0.0
  %468 = vmatpush1.msra.mxu0 0.0
  %469 = vmatprep.subr.mxu0 0.0
  %470 = vmatpush1.msra.mxu0 0.0
  %471 = vmatprep.subr.mxu0 0.0
  %472 = vmatpush1.msra.mxu0 0.0
  %473 = vmatprep.subr.mxu0 0.0
  %474 = vmatpush1.msra.mxu0 0.0
  %475 = vmatprep.mubr.f32.mxu0 0.0
  %476 = vmatmul.mubr.f32.gmra.mrb[0].mxu0 %v409
  %v477 = vpop.f32.mrb[0].mxu0
  %v478 = vadd.f32 0.0, %v477
  %v479 = vpop.f32.mrb[0].mxu0
  %480 = vdwg.mxu0
  %v481 = vadd.f32 %v180, %v478
  %v482 = vtanh.pop %v481
  %v484 = vsel %vm257, %v482, 0
  %486 = vmatprep.subr.mxu0 0.0
  %487 = vmatpush1.msra.mxu0 %v248
  %488 = vmatprep.subr.mxu0 0.0
  %489 = vmatpush1.msra.mxu0 %v249
  %490 = vmatprep.subr.mxu0 0.0
  %491 = vmatpush1.msra.mxu0 %v250
  %492 = vmatprep.subr.mxu0 0.0
  %493 = vmatpush1.msra.mxu0 %v251
  %494 = vmatprep.subr.mxu0 0.0
  %495 = vmatpush1.msra.mxu0 0.0
  %496 = vmatprep.subr.mxu0 0.0
  %497 = vmatpush1.msra.mxu0 0.0
  %498 = vmatprep.subr.mxu0 0.0
  %499 = vmatpush1.msra.mxu0 0.0
  %500 = vmatprep.subr.mxu0 0.0
  %501 = vmatpush1.msra.mxu0 0.0
  %502 = vmatprep.subr.mxu0 0.0
  %503 = vmatpush1.msra.mxu0 0.0
  %504 = vmatprep.subr.mxu0 0.0
  %505 = vmatpush1.msra.mxu0 0.0
  %506 = vmatprep.subr.mxu0 0.0
  %507 = vmatpush1.msra.mxu0 0.0
  %508 = vmatprep.subr.mxu0 0.0
  %509 = vmatpush1.msra.mxu0 0.0
  %510 = vmatprep.subr.mxu0 0.0
  %511 = vmatpush1.msra.mxu0 0.0
  %512 = vmatprep.subr.mxu0 0.0
  %513 = vmatpush1.msra.mxu0 0.0
  %514 = vmatprep.subr.mxu0 0.0
  %515 = vmatpush1.msra.mxu0 0.0
  %516 = vmatprep.subr.mxu0 0.0
  %517 = vmatpush1.msra.mxu0 0.0
  %518 = vmatprep.subr.mxu0 0.0
  %519 = vmatpush1.msra.mxu0 0.0
  %520 = vmatprep.subr.mxu0 0.0
  %521 = vmatpush1.msra.mxu0 0.0
  %522 = vmatprep.subr.mxu0 0.0
  %523 = vmatpush1.msra.mxu0 0.0
  %524 = vmatprep.subr.mxu0 0.0
  %525 = vmatpush1.msra.mxu0 0.0
  %526 = vmatprep.subr.mxu0 0.0
  %527 = vmatpush1.msra.mxu0 0.0
  %528 = vmatprep.subr.mxu0 0.0
  %529 = vmatpush1.msra.mxu0 0.0
  %530 = vmatprep.subr.mxu0 0.0
  %531 = vmatpush1.msra.mxu0 0.0
  %532 = vmatprep.subr.mxu0 0.0
  %533 = vmatpush1.msra.mxu0 0.0
  %534 = vmatprep.subr.mxu0 0.0
  %535 = vmatpush1.msra.mxu0 0.0
  %536 = vmatprep.subr.mxu0 0.0
  %537 = vmatpush1.msra.mxu0 0.0
  %538 = vmatprep.subr.mxu0 0.0
  %539 = vmatpush1.msra.mxu0 0.0
  %540 = vmatprep.subr.mxu0 0.0
  %541 = vmatpush1.msra.mxu0 0.0
  %542 = vmatprep.subr.mxu0 0.0
  %543 = vmatpush1.msra.mxu0 0.0
  %544 = vmatprep.subr.mxu0 0.0
  %545 = vmatpush1.msra.mxu0 0.0
  %546 = vmatprep.subr.mxu0 0.0
  %547 = vmatpush1.msra.mxu0 0.0
  %548 = vmatprep.subr.mxu0 0.0
  %549 = vmatpush1.msra.mxu0 0.0
  %550 = vmatprep.mubr.f32.mxu0 0.0
  %551 = vmatmul.mubr.f32.gmra.mrb[0].mxu0 %v484
  %v552 = vpop.f32.mrb[0].mxu0
  %v553 = vadd.f32 0.0, %v552
  %v554 = vpop.f32.mrb[0].mxu0
  %555 = vdwg.mxu0
  %v556 = vadd.f32 %v185, %v553
  %v557 = vtanh.pop %v556
  %v559 = vsel %vm257, %v557, 0
  %561 = vmatprep.subr.mxu0 0.0
  %562 = vmatpush1.msra.mxu0 %v248
  %563 = vmatprep.subr.mxu0 0.0
  %564 = vmatpush1.msra.mxu0 %v249
  %565 = vmatprep.subr.mxu0 0.0
  %566 = vmatpush1.msra.mxu0 %v250
  %567 = vmatprep.subr.mxu0 0.0
  %568 = vmatpush1.msra.mxu0 %v251
  %569 = vmatprep.subr.mxu0 0.0
  %570 = vmatpush1.msra.mxu0 0.0
  %571 = vmatprep.subr.mxu0 0.0
  %572 = vmatpush1.msra.mxu0 0.0
  %573 = vmatprep.subr.mxu0 0.0
  %574 = vmatpush1.msra.mxu0 0.0
  %575 = vmatprep.subr.mxu0 0.0
  %576 = vmatpush1.msra.mxu0 0.0
  %577 = vmatprep.subr.mxu0 0.0
  %578 = vmatpush1.msra.mxu0 0.0
  %579 = vmatprep.subr.mxu0 0.0
  %580 = vmatpush1.msra.mxu0 0.0
  %581 = vmatprep.subr.mxu0 0.0
  %582 = vmatpush1.msra.mxu0 0.0
  %583 = vmatprep.subr.mxu0 0.0
  %584 = vmatpush1.msra.mxu0 0.0
  %585 = vmatprep.subr.mxu0 0.0
  %586 = vmatpush1.msra.mxu0 0.0
  %587 = vmatprep.subr.mxu0 0.0
  %588 = vmatpush1.msra.mxu0 0.0
  %589 = vmatprep.subr.mxu0 0.0
  %590 = vmatpush1.msra.mxu0 0.0
  %591 = vmatprep.subr.mxu0 0.0
  %592 = vmatpush1.msra.mxu0 0.0
  %593 = vmatprep.subr.mxu0 0.0
  %594 = vmatpush1.msra.mxu0 0.0
  %595 = vmatprep.subr.mxu0 0.0
  %596 = vmatpush1.msra.mxu0 0.0
  %597 = vmatprep.subr.mxu0 0.0
  %598 = vmatpush1.msra.mxu0 0.0
  %599 = vmatprep.subr.mxu0 0.0
  %600 = vmatpush1.msra.mxu0 0.0
  %601 = vmatprep.subr.mxu0 0.0
  %602 = vmatpush1.msra.mxu0 0.0
  %603 = vmatprep.subr.mxu0 0.0
  %604 = vmatpush1.msra.mxu0 0.0
  %605 = vmatprep.subr.mxu0 0.0
  %606 = vmatpush1.msra.mxu0 0.0
  %607 = vmatprep.subr.mxu0 0.0
  %608 = vmatpush1.msra.mxu0 0.0
  %609 = vmatprep.subr.mxu0 0.0
  %610 = vmatpush1.msra.mxu0 0.0
  %611 = vmatprep.subr.mxu0 0.0
  %612 = vmatpush1.msra.mxu0 0.0
  %613 = vmatprep.subr.mxu0 0.0
  %614 = vmatpush1.msra.mxu0 0.0
  %615 = vmatprep.subr.mxu0 0.0
  %616 = vmatpush1.msra.mxu0 0.0
  %617 = vmatprep.subr.mxu0 0.0
  %618 = vmatpush1.msra.mxu0 0.0
  %619 = vmatprep.subr.mxu0 0.0
  %620 = vmatpush1.msra.mxu0 0.0
  %621 = vmatprep.subr.mxu0 0.0
  %622 = vmatpush1.msra.mxu0 0.0
  %623 = vmatprep.subr.mxu0 0.0
  %624 = vmatpush1.msra.mxu0 0.0
  %625 = vmatprep.mubr.f32.mxu0 0.0
  %626 = vmatmul.mubr.f32.gmra.mrb[0].mxu0 %v559
  %v627 = vpop.f32.mrb[0].mxu0
  %v628 = vadd.f32 0.0, %v627
  %v629 = vpop.f32.mrb[0].mxu0
  %630 = vdwg.mxu0
  %v631 = vadd.f32 %v190, %v628
  %v632 = vtanh.pop %v631
  %v634 = vsel %vm257, %v632, 0
  %636 = vmatprep.subr.mxu0 0.0
  %637 = vmatpush1.msra.mxu0 %v248
  %638 = vmatprep.subr.mxu0 0.0
  %639 = vmatpush1.msra.mxu0 %v249
  %640 = vmatprep.subr.mxu0 0.0
  %641 = vmatpush1.msra.mxu0 %v250
  %642 = vmatprep.subr.mxu0 0.0
  %643 = vmatpush1.msra.mxu0 %v251
  %644 = vmatprep.subr.mxu0 0.0
  %645 = vmatpush1.msra.mxu0 0.0
  %646 = vmatprep.subr.mxu0 0.0
  %647 = vmatpush1.msra.mxu0 0.0
  %648 = vmatprep.subr.mxu0 0.0
  %649 = vmatpush1.msra.mxu0 0.0
  %650 = vmatprep.subr.mxu0 0.0
  %651 = vmatpush1.msra.mxu0 0.0
  %652 = vmatprep.subr.mxu0 0.0
  %653 = vmatpush1.msra.mxu0 0.0
  %654 = vmatprep.subr.mxu0 0.0
  %655 = vmatpush1.msra.mxu0 0.0
  %656 = vmatprep.subr.mxu0 0.0
  %657 = vmatpush1.msra.mxu0 0.0
  %658 = vmatprep.subr.mxu0 0.0
  %659 = vmatpush1.msra.mxu0 0.0
  %660 = vmatprep.subr.mxu0 0.0
  %661 = vmatpush1.msra.mxu0 0.0
  %662 = vmatprep.subr.mxu0 0.0
  %663 = vmatpush1.msra.mxu0 0.0
  %664 = vmatprep.subr.mxu0 0.0
  %665 = vmatpush1.msra.mxu0 0.0
  %666 = vmatprep.subr.mxu0 0.0
  %667 = vmatpush1.msra.mxu0 0.0
  %668 = vmatprep.subr.mxu0 0.0
  %669 = vmatpush1.msra.mxu0 0.0
  %670 = vmatprep.subr.mxu0 0.0
  %671 = vmatpush1.msra.mxu0 0.0
  %672 = vmatprep.subr.mxu0 0.0
  %673 = vmatpush1.msra.mxu0 0.0
  %674 = vmatprep.subr.mxu0 0.0
  %675 = vmatpush1.msra.mxu0 0.0
  %676 = vmatprep.subr.mxu0 0.0
  %677 = vmatpush1.msra.mxu0 0.0
  %678 = vmatprep.subr.mxu0 0.0
  %679 = vmatpush1.msra.mxu0 0.0
  %680 = vmatprep.subr.mxu0 0.0
  %681 = vmatpush1.msra.mxu0 0.0
  %682 = vmatprep.subr.mxu0 0.0
  %683 = vmatpush1.msra.mxu0 0.0
  %684 = vmatprep.subr.mxu0 0.0
  %685 = vmatpush1.msra.mxu0 0.0
  %686 = vmatprep.subr.mxu0 0.0
  %687 = vmatpush1.msra.mxu0 0.0
  %688 = vmatprep.subr.mxu0 0.0
  %689 = vmatpush1.msra.mxu0 0.0
  %690 = vmatprep.subr.mxu0 0.0
  %691 = vmatpush1.msra.mxu0 0.0
  %692 = vmatprep.subr.mxu0 0.0
  %693 = vmatpush1.msra.mxu0 0.0
  %694 = vmatprep.subr.mxu0 0.0
  %695 = vmatpush1.msra.mxu0 0.0
  %696 = vmatprep.subr.mxu0 0.0
  %697 = vmatpush1.msra.mxu0 0.0
  %698 = vmatprep.subr.mxu0 0.0
  %699 = vmatpush1.msra.mxu0 0.0
  %700 = vmatprep.mubr.f32.mxu0 0.0
  %701 = vmatmul.mubr.f32.gmra.mrb[0].mxu0 %v634
  %v702 = vpop.f32.mrb[0].mxu0
  %v703 = vadd.f32 0.0, %v702
  %v704 = vpop.f32.mrb[0].mxu0
  %705 = vdwg.mxu0
  %v706 = vadd.f32 %v195, %v703
  %v707 = vtanh.pop %v706
  %v709 = vsel %vm257, %v707, 0
  %711 = vmatprep.subr.mxu0 0.0
  %712 = vmatpush1.msra.mxu0 %v248
  %713 = vmatprep.subr.mxu0 0.0
  %714 = vmatpush1.msra.mxu0 %v249
  %715 = vmatprep.subr.mxu0 0.0
  %716 = vmatpush1.msra.mxu0 %v250
  %717 = vmatprep.subr.mxu0 0.0
  %718 = vmatpush1.msra.mxu0 %v251
  %719 = vmatprep.subr.mxu0 0.0
  %720 = vmatpush1.msra.mxu0 0.0
  %721 = vmatprep.subr.mxu0 0.0
  %722 = vmatpush1.msra.mxu0 0.0
  %723 = vmatprep.subr.mxu0 0.0
  %724 = vmatpush1.msra.mxu0 0.0
  %725 = vmatprep.subr.mxu0 0.0
  %726 = vmatpush1.msra.mxu0 0.0
  %727 = vmatprep.subr.mxu0 0.0
  %728 = vmatpush1.msra.mxu0 0.0
  %729 = vmatprep.subr.mxu0 0.0
  %730 = vmatpush1.msra.mxu0 0.0
  %731 = vmatprep.subr.mxu0 0.0
  %732 = vmatpush1.msra.mxu0 0.0
  %733 = vmatprep.subr.mxu0 0.0
  %734 = vmatpush1.msra.mxu0 0.0
  %735 = vmatprep.subr.mxu0 0.0
  %736 = vmatpush1.msra.mxu0 0.0
  %737 = vmatprep.subr.mxu0 0.0
  %738 = vmatpush1.msra.mxu0 0.0
  %739 = vmatprep.subr.mxu0 0.0
  %740 = vmatpush1.msra.mxu0 0.0
  %741 = vmatprep.subr.mxu0 0.0
  %742 = vmatpush1.msra.mxu0 0.0
  %743 = vmatprep.subr.mxu0 0.0
  %744 = vmatpush1.msra.mxu0 0.0
  %745 = vmatprep.subr.mxu0 0.0
  %746 = vmatpush1.msra.mxu0 0.0
  %747 = vmatprep.subr.mxu0 0.0
  %748 = vmatpush1.msra.mxu0 0.0
  %749 = vmatprep.subr.mxu0 0.0
  %750 = vmatpush1.msra.mxu0 0.0
  %751 = vmatprep.subr.mxu0 0.0
  %752 = vmatpush1.msra.mxu0 0.0
  %753 = vmatprep.subr.mxu0 0.0
  %754 = vmatpush1.msra.mxu0 0.0
  %755 = vmatprep.subr.mxu0 0.0
  %756 = vmatpush1.msra.mxu0 0.0
  %757 = vmatprep.subr.mxu0 0.0
  %758 = vmatpush1.msra.mxu0 0.0
  %759 = vmatprep.subr.mxu0 0.0
  %760 = vmatpush1.msra.mxu0 0.0
  %761 = vmatprep.subr.mxu0 0.0
  %762 = vmatpush1.msra.mxu0 0.0
  %763 = vmatprep.subr.mxu0 0.0
  %764 = vmatpush1.msra.mxu0 0.0
  %765 = vmatprep.subr.mxu0 0.0
  %766 = vmatpush1.msra.mxu0 0.0
  %767 = vmatprep.subr.mxu0 0.0
  %768 = vmatpush1.msra.mxu0 0.0
  %769 = vmatprep.subr.mxu0 0.0
  %770 = vmatpush1.msra.mxu0 0.0
  %771 = vmatprep.subr.mxu0 0.0
  %772 = vmatpush1.msra.mxu0 0.0
  %773 = vmatprep.subr.mxu0 0.0
  %774 = vmatpush1.msra.mxu0 0.0
  %775 = vmatprep.mubr.f32.mxu0 0.0
  %776 = vmatmul.mubr.f32.gmra.mrb[0].mxu0 %v709
  %v777 = vpop.f32.mrb[0].mxu0
  %v778 = vadd.f32 0.0, %v777
  %v779 = vpop.f32.mrb[0].mxu0
  %780 = vdwg.mxu0
  %v781 = vadd.f32 %v200, %v778
  %v782 = vtanh.pop %v781
  %v784 = vsel %vm257, %v782, 0
  %786 = vmatprep.subr.mxu0 0.0
  %787 = vmatpush1.msra.mxu0 %v248
  %788 = vmatprep.subr.mxu0 0.0
  %789 = vmatpush1.msra.mxu0 %v249
  %790 = vmatprep.subr.mxu0 0.0
  %791 = vmatpush1.msra.mxu0 %v250
  %792 = vmatprep.subr.mxu0 0.0
  %793 = vmatpush1.msra.mxu0 %v251
  %794 = vmatprep.subr.mxu0 0.0
  %795 = vmatpush1.msra.mxu0 0.0
  %796 = vmatprep.subr.mxu0 0.0
  %797 = vmatpush1.msra.mxu0 0.0
  %798 = vmatprep.subr.mxu0 0.0
  %799 = vmatpush1.msra.mxu0 0.0
  %800 = vmatprep.subr.mxu0 0.0
  %801 = vmatpush1.msra.mxu0 0.0
  %802 = vmatprep.subr.mxu0 0.0
  %803 = vmatpush1.msra.mxu0 0.0
  %804 = vmatprep.subr.mxu0 0.0
  %805 = vmatpush1.msra.mxu0 0.0
  %806 = vmatprep.subr.mxu0 0.0
  %807 = vmatpush1.msra.mxu0 0.0
  %808 = vmatprep.subr.mxu0 0.0
  %809 = vmatpush1.msra.mxu0 0.0
  %810 = vmatprep.subr.mxu0 0.0
  %811 = vmatpush1.msra.mxu0 0.0
  %812 = vmatprep.subr.mxu0 0.0
  %813 = vmatpush1.msra.mxu0 0.0
  %814 = vmatprep.subr.mxu0 0.0
  %815 = vmatpush1.msra.mxu0 0.0
  %816 = vmatprep.subr.mxu0 0.0
  %817 = vmatpush1.msra.mxu0 0.0
  %818 = vmatprep.subr.mxu0 0.0
  %819 = vmatpush1.msra.mxu0 0.0
  %820 = vmatprep.subr.mxu0 0.0
  %821 = vmatpush1.msra.mxu0 0.0
  %822 = vmatprep.subr.mxu0 0.0
  %823 = vmatpush1.msra.mxu0 0.0
  %824 = vmatprep.subr.mxu0 0.0
  %825 = vmatpush1.msra.mxu0 0.0
  %826 = vmatprep.subr.mxu0 0.0
  %827 = vmatpush1.msra.mxu0 0.0
  %828 = vmatprep.subr.mxu0 0.0
  %829 = vmatpush1.msra.mxu0 0.0
  %830 = vmatprep.subr.mxu0 0.0
  %831 = vmatpush1.msra.mxu0 0.0
  %832 = vmatprep.subr.mxu0 0.0
  %833 = vmatpush1.msra.mxu0 0.0
  %834 = vmatprep.subr.mxu0 0.0
  %835 = vmatpush1.msra.mxu0 0.0
  %836 = vmatprep.subr.mxu0 0.0
  %837 = vmatpush1.msra.mxu0 0.0
  %838 = vmatprep.subr.mxu0 0.0
  %839 = vmatpush1.msra.mxu0 0.0
  %840 = vmatprep.subr.mxu0 0.0
  %841 = vmatpush1.msra.mxu0 0.0
  %842 = vmatprep.subr.mxu0 0.0
  %843 = vmatpush1.msra.mxu0 0.0
  %844 = vmatprep.subr.mxu0 0.0
  %845 = vmatpush1.msra.mxu0 0.0
  %846 = vmatprep.subr.mxu0 0.0
  %847 = vmatpush1.msra.mxu0 0.0
  %848 = vmatprep.subr.mxu0 0.0
  %849 = vmatpush1.msra.mxu0 0.0
  %850 = vmatprep.mubr.f32.mxu0 0.0
  %851 = vmatmul.mubr.f32.gmra.mrb[0].mxu0 %v784
  %v852 = vpop.f32.mrb[0].mxu0
  %v853 = vadd.f32 0.0, %v852
  %v854 = vpop.f32.mrb[0].mxu0
  %855 = vdwg.mxu0
  %v856 = vadd.f32 %v205, %v853
  %v857 = vtanh.pop %v856
  %v859 = vsel %vm257, %v857, 0
  %861 = vmatprep.subr.mxu0 0.0
  %862 = vmatpush1.msra.mxu0 %v252
  %863 = vmatprep.subr.mxu0 0.0
  %864 = vmatpush1.msra.mxu0 %v253
  %865 = vmatprep.subr.mxu0 0.0
  %866 = vmatpush1.msra.mxu0 %v254
  %867 = vmatprep.subr.mxu0 0.0
  %868 = vmatpush1.msra.mxu0 %v255
  %869 = vmatprep.subr.mxu0 0.0
  %870 = vmatpush1.msra.mxu0 0.0
  %871 = vmatprep.subr.mxu0 0.0
  %872 = vmatpush1.msra.mxu0 0.0
  %873 = vmatprep.subr.mxu0 0.0
  %874 = vmatpush1.msra.mxu0 0.0
  %875 = vmatprep.subr.mxu0 0.0
  %876 = vmatpush1.msra.mxu0 0.0
  %877 = vmatprep.subr.mxu0 0.0
  %878 = vmatpush1.msra.mxu0 0.0
  %879 = vmatprep.subr.mxu0 0.0
  %880 = vmatpush1.msra.mxu0 0.0
  %881 = vmatprep.subr.mxu0 0.0
  %882 = vmatpush1.msra.mxu0 0.0
  %883 = vmatprep.subr.mxu0 0.0
  %884 = vmatpush1.msra.mxu0 0.0
  %885 = vmatprep.subr.mxu0 0.0
  %886 = vmatpush1.msra.mxu0 0.0
  %887 = vmatprep.subr.mxu0 0.0
  %888 = vmatpush1.msra.mxu0 0.0
  %889 = vmatprep.subr.mxu0 0.0
  %890 = vmatpush1.msra.mxu0 0.0
  %891 = vmatprep.subr.mxu0 0.0
  %892 = vmatpush1.msra.mxu0 0.0
  %893 = vmatprep.subr.mxu0 0.0
  %894 = vmatpush1.msra.mxu0 0.0
  %895 = vmatprep.subr.mxu0 0.0
  %896 = vmatpush1.msra.mxu0 0.0
  %897 = vmatprep.subr.mxu0 0.0
  %898 = vmatpush1.msra.mxu0 0.0
  %899 = vmatprep.subr.mxu0 0.0
  %900 = vmatpush1.msra.mxu0 0.0
  %901 = vmatprep.subr.mxu0 0.0
  %902 = vmatpush1.msra.mxu0 0.0
  %903 = vmatprep.subr.mxu0 0.0
  %904 = vmatpush1.msra.mxu0 0.0
  %905 = vmatprep.subr.mxu0 0.0
  %906 = vmatpush1.msra.mxu0 0.0
  %907 = vmatprep.subr.mxu0 0.0
  %908 = vmatpush1.msra.mxu0 0.0
  %909 = vmatprep.subr.mxu0 0.0
  %910 = vmatpush1.msra.mxu0 0.0
  %911 = vmatprep.subr.mxu0 0.0
  %912 = vmatpush1.msra.mxu0 0.0
  %913 = vmatprep.subr.mxu0 0.0
  %914 = vmatpush1.msra.mxu0 0.0
  %915 = vmatprep.subr.mxu0 0.0
  %916 = vmatpush1.msra.mxu0 0.0
  %917 = vmatprep.subr.mxu0 0.0
  %918 = vmatpush1.msra.mxu0 0.0
  %919 = vmatprep.subr.mxu0 0.0
  %920 = vmatpush1.msra.mxu0 0.0
  %921 = vmatprep.subr.mxu0 0.0
  %922 = vmatpush1.msra.mxu0 0.0
  %923 = vmatprep.subr.mxu0 0.0
  %924 = vmatpush1.msra.mxu0 0.0
  %925 = vmatprep.mubr.f32.mxu0 0.0
  %926 = vmatmul.mubr.f32.gmra.mrb[0].mxu0 %v859
  %v927 = vpop.f32.mrb[0].mxu0
  %v928 = vadd.f32 0.0, %v927
  %v929 = vpop.f32.mrb[0].mxu0
  %930 = vdwg.mxu0
  %932 = vrot.lane.b32.xlu0 %v928, 32
  %v933 = vpop.permute.xlu0 %932
  %v935 = vadd.f32 %v210, %v933
  %v936 = vtanh.pop %v935
  %938 = vrot.lane.b32.xlu0 %v936, 96
  %v939 = vpop.permute.xlu0 %938
  %v940 = vsel %vm257, %v939, 0
  %942 = vmatprep.subr.mxu0 0.0
  %943 = vmatpush1.msra.mxu0 %v252
  %944 = vmatprep.subr.mxu0 0.0
  %945 = vmatpush1.msra.mxu0 %v253
  %946 = vmatprep.subr.mxu0 0.0
  %947 = vmatpush1.msra.mxu0 %v254
  %948 = vmatprep.subr.mxu0 0.0
  %949 = vmatpush1.msra.mxu0 %v255
  %950 = vmatprep.subr.mxu0 0.0
  %951 = vmatpush1.msra.mxu0 0.0
  %952 = vmatprep.subr.mxu0 0.0
  %953 = vmatpush1.msra.mxu0 0.0
  %954 = vmatprep.subr.mxu0 0.0
  %955 = vmatpush1.msra.mxu0 0.0
  %956 = vmatprep.subr.mxu0 0.0
  %957 = vmatpush1.msra.mxu0 0.0
  %958 = vmatprep.subr.mxu0 0.0
  %959 = vmatpush1.msra.mxu0 0.0
  %960 = vmatprep.subr.mxu0 0.0
  %961 = vmatpush1.msra.mxu0 0.0
  %962 = vmatprep.subr.mxu0 0.0
  %963 = vmatpush1.msra.mxu0 0.0
  %964 = vmatprep.subr.mxu0 0.0
  %965 = vmatpush1.msra.mxu0 0.0
  %966 = vmatprep.subr.mxu0 0.0
  %967 = vmatpush1.msra.mxu0 0.0
  %968 = vmatprep.subr.mxu0 0.0
  %969 = vmatpush1.msra.mxu0 0.0
  %970 = vmatprep.subr.mxu0 0.0
  %971 = vmatpush1.msra.mxu0 0.0
  %972 = vmatprep.subr.mxu0 0.0
  %973 = vmatpush1.msra.mxu0 0.0
  %974 = vmatprep.subr.mxu0 0.0
  %975 = vmatpush1.msra.mxu0 0.0
  %976 = vmatprep.subr.mxu0 0.0
  %977 = vmatpush1.msra.mxu0 0.0
  %978 = vmatprep.subr.mxu0 0.0
  %979 = vmatpush1.msra.mxu0 0.0
  %980 = vmatprep.subr.mxu0 0.0
  %981 = vmatpush1.msra.mxu0 0.0
  %982 = vmatprep.subr.mxu0 0.0
  %983 = vmatpush1.msra.mxu0 0.0
  %984 = vmatprep.subr.mxu0 0.0
  %985 = vmatpush1.msra.mxu0 0.0
  %986 = vmatprep.subr.mxu0 0.0
  %987 = vmatpush1.msra.mxu0 0.0
  %988 = vmatprep.subr.mxu0 0.0
  %989 = vmatpush1.msra.mxu0 0.0
  %990 = vmatprep.subr.mxu0 0.0
  %991 = vmatpush1.msra.mxu0 0.0
  %992 = vmatprep.subr.mxu0 0.0
  %993 = vmatpush1.msra.mxu0 0.0
  %994 = vmatprep.subr.mxu0 0.0
  %995 = vmatpush1.msra.mxu0 0.0
  %996 = vmatprep.subr.mxu0 0.0
  %997 = vmatpush1.msra.mxu0 0.0
  %998 = vmatprep.subr.mxu0 0.0
  %999 = vmatpush1.msra.mxu0 0.0
  %1000 = vmatprep.subr.mxu0 0.0
  %1001 = vmatpush1.msra.mxu0 0.0
  %1002 = vmatprep.subr.mxu0 0.0
  %1003 = vmatpush1.msra.mxu0 0.0
  %1004 = vmatprep.subr.mxu0 0.0
  %1005 = vmatpush1.msra.mxu0 0.0
  %1006 = vmatprep.mubr.f32.mxu0 0.0
  %1007 = vmatmul.mubr.f32.gmra.mrb[0].mxu0 %v940
  %v1008 = vpop.f32.mrb[0].mxu0
  %v1009 = vadd.f32 0.0, %v1008
  %v1010 = vpop.f32.mrb[0].mxu0
  %1011 = vdwg.mxu0
  %1013 = vrot.lane.b32.xlu0 %v1009, 32
  %v1014 = vpop.permute.xlu0 %1013
  %v1016 = vadd.f32 %v215, %v1014
  %v1017 = vtanh.pop %v1016
  %1019 = vrot.lane.b32.xlu0 %v1017, 96
  %v1020 = vpop.permute.xlu0 %1019
  %v1021 = vsel %vm257, %v1020, 0
  %1023 = vmatprep.subr.mxu0 0.0
  %1024 = vmatpush1.msra.mxu0 %v252
  %1025 = vmatprep.subr.mxu0 0.0
  %1026 = vmatpush1.msra.mxu0 %v253
  %1027 = vmatprep.subr.mxu0 0.0
  %1028 = vmatpush1.msra.mxu0 %v254
  %1029 = vmatprep.subr.mxu0 0.0
  %1030 = vmatpush1.msra.mxu0 %v255
  %1031 = vmatprep.subr.mxu0 0.0
  %1032 = vmatpush1.msra.mxu0 0.0
  %1033 = vmatprep.subr.mxu0 0.0
  %1034 = vmatpush1.msra.mxu0 0.0
  %1035 = vmatprep.subr.mxu0 0.0
  %1036 = vmatpush1.msra.mxu0 0.0
  %1037 = vmatprep.subr.mxu0 0.0
  %1038 = vmatpush1.msra.mxu0 0.0
  %1039 = vmatprep.subr.mxu0 0.0
  %1040 = vmatpush1.msra.mxu0 0.0
  %1041 = vmatprep.subr.mxu0 0.0
  %1042 = vmatpush1.msra.mxu0 0.0
  %1043 = vmatprep.subr.mxu0 0.0
  %1044 = vmatpush1.msra.mxu0 0.0
  %1045 = vmatprep.subr.mxu0 0.0
  %1046 = vmatpush1.msra.mxu0 0.0
  %1047 = vmatprep.subr.mxu0 0.0
  %1048 = vmatpush1.msra.mxu0 0.0
  %1049 = vmatprep.subr.mxu0 0.0
  %1050 = vmatpush1.msra.mxu0 0.0
  %1051 = vmatprep.subr.mxu0 0.0
  %1052 = vmatpush1.msra.mxu0 0.0
  %1053 = vmatprep.subr.mxu0 0.0
  %1054 = vmatpush1.msra.mxu0 0.0
  %1055 = vmatprep.subr.mxu0 0.0
  %1056 = vmatpush1.msra.mxu0 0.0
  %1057 = vmatprep.subr.mxu0 0.0
  %1058 = vmatpush1.msra.mxu0 0.0
  %1059 = vmatprep.subr.mxu0 0.0
  %1060 = vmatpush1.msra.mxu0 0.0
  %1061 = vmatprep.subr.mxu0 0.0
  %1062 = vmatpush1.msra.mxu0 0.0
  %1063 = vmatprep.subr.mxu0 0.0
  %1064 = vmatpush1.msra.mxu0 0.0
  %1065 = vmatprep.subr.mxu0 0.0
  %1066 = vmatpush1.msra.mxu0 0.0
  %1067 = vmatprep.subr.mxu0 0.0
  %1068 = vmatpush1.msra.mxu0 0.0
  %1069 = vmatprep.subr.mxu0 0.0
  %1070 = vmatpush1.msra.mxu0 0.0
  %1071 = vmatprep.subr.mxu0 0.0
  %1072 = vmatpush1.msra.mxu0 0.0
  %1073 = vmatprep.subr.mxu0 0.0
  %1074 = vmatpush1.msra.mxu0 0.0
  %1075 = vmatprep.subr.mxu0 0.0
  %1076 = vmatpush1.msra.mxu0 0.0
  %1077 = vmatprep.subr.mxu0 0.0
  %1078 = vmatpush1.msra.mxu0 0.0
  %1079 = vmatprep.subr.mxu0 0.0
  %1080 = vmatpush1.msra.mxu0 0.0
  %1081 = vmatprep.subr.mxu0 0.0
  %1082 = vmatpush1.msra.mxu0 0.0
  %1083 = vmatprep.subr.mxu0 0.0
  %1084 = vmatpush1.msra.mxu0 0.0
  %1085 = vmatprep.subr.mxu0 0.0
  %1086 = vmatpush1.msra.mxu0 0.0
  %1087 = vmatprep.mubr.f32.mxu0 0.0
  %1088 = vmatmul.mubr.f32.gmra.mrb[0].mxu0 %v1021
  %v1089 = vpop.f32.mrb[0].mxu0
  %v1090 = vadd.f32 0.0, %v1089
  %v1091 = vpop.f32.mrb[0].mxu0
  %1092 = vdwg.mxu0
  %1094 = vrot.lane.b32.xlu0 %v1090, 32
  %v1095 = vpop.permute.xlu0 %1094
  %v1097 = vadd.f32 %v220, %v1095
  %v1098 = vtanh.pop %v1097
  %1100 = vrot.lane.b32.xlu0 %v1098, 96
  %v1101 = vpop.permute.xlu0 %1100
  %v1102 = vsel %vm257, %v1101, 0
  %1104 = vmatprep.subr.mxu0 0.0
  %1105 = vmatpush1.msra.mxu0 %v252
  %1106 = vmatprep.subr.mxu0 0.0
  %1107 = vmatpush1.msra.mxu0 %v253
  %1108 = vmatprep.subr.mxu0 0.0
  %1109 = vmatpush1.msra.mxu0 %v254
  %1110 = vmatprep.subr.mxu0 0.0
  %1111 = vmatpush1.msra.mxu0 %v255
  %1112 = vmatprep.subr.mxu0 0.0
  %1113 = vmatpush1.msra.mxu0 0.0
  %1114 = vmatprep.subr.mxu0 0.0
  %1115 = vmatpush1.msra.mxu0 0.0
  %1116 = vmatprep.subr.mxu0 0.0
  %1117 = vmatpush1.msra.mxu0 0.0
  %1118 = vmatprep.subr.mxu0 0.0
  %1119 = vmatpush1.msra.mxu0 0.0
  %1120 = vmatprep.subr.mxu0 0.0
  %1121 = vmatpush1.msra.mxu0 0.0
  %1122 = vmatprep.subr.mxu0 0.0
  %1123 = vmatpush1.msra.mxu0 0.0
  %1124 = vmatprep.subr.mxu0 0.0
  %1125 = vmatpush1.msra.mxu0 0.0
  %1126 = vmatprep.subr.mxu0 0.0
  %1127 = vmatpush1.msra.mxu0 0.0
  %1128 = vmatprep.subr.mxu0 0.0
  %1129 = vmatpush1.msra.mxu0 0.0
  %1130 = vmatprep.subr.mxu0 0.0
  %1131 = vmatpush1.msra.mxu0 0.0
  %1132 = vmatprep.subr.mxu0 0.0
  %1133 = vmatpush1.msra.mxu0 0.0
  %1134 = vmatprep.subr.mxu0 0.0
  %1135 = vmatpush1.msra.mxu0 0.0
  %1136 = vmatprep.subr.mxu0 0.0
  %1137 = vmatpush1.msra.mxu0 0.0
  %1138 = vmatprep.subr.mxu0 0.0
  %1139 = vmatpush1.msra.mxu0 0.0
  %1140 = vmatprep.subr.mxu0 0.0
  %1141 = vmatpush1.msra.mxu0 0.0
  %1142 = vmatprep.subr.mxu0 0.0
  %1143 = vmatpush1.msra.mxu0 0.0
  %1144 = vmatprep.subr.mxu0 0.0
  %1145 = vmatpush1.msra.mxu0 0.0
  %1146 = vmatprep.subr.mxu0 0.0
  %1147 = vmatpush1.msra.mxu0 0.0
  %1148 = vmatprep.subr.mxu0 0.0
  %1149 = vmatpush1.msra.mxu0 0.0
  %1150 = vmatprep.subr.mxu0 0.0
  %1151 = vmatpush1.msra.mxu0 0.0
  %1152 = vmatprep.subr.mxu0 0.0
  %1153 = vmatpush1.msra.mxu0 0.0
  %1154 = vmatprep.subr.mxu0 0.0
  %1155 = vmatpush1.msra.mxu0 0.0
  %1156 = vmatprep.subr.mxu0 0.0
  %1157 = vmatpush1.msra.mxu0 0.0
  %1158 = vmatprep.subr.mxu0 0.0
  %1159 = vmatpush1.msra.mxu0 0.0
  %1160 = vmatprep.subr.mxu0 0.0
  %1161 = vmatpush1.msra.mxu0 0.0
  %1162 = vmatprep.subr.mxu0 0.0
  %1163 = vmatpush1.msra.mxu0 0.0
  %1164 = vmatprep.subr.mxu0 0.0
  %1165 = vmatpush1.msra.mxu0 0.0
  %1166 = vmatprep.subr.mxu0 0.0
  %1167 = vmatpush1.msra.mxu0 0.0
  %1168 = vmatprep.mubr.f32.mxu0 0.0
  %1169 = vmatmul.mubr.f32.gmra.mrb[0].mxu0 %v1102
  %v1170 = vpop.f32.mrb[0].mxu0
  %v1171 = vadd.f32 0.0, %v1170
  %v1172 = vpop.f32.mrb[0].mxu0
  %1173 = vdwg.mxu0
  %1175 = vrot.lane.b32.xlu0 %v1171, 32
  %v1176 = vpop.permute.xlu0 %1175
  %v1178 = vadd.f32 %v225, %v1176
  %v1179 = vtanh.pop %v1178
  %1181 = vrot.lane.b32.xlu0 %v1179, 96
  %v1182 = vpop.permute.xlu0 %1181
  %v1183 = vsel %vm257, %v1182, 0
  %1185 = vmatprep.subr.mxu0 0.0
  %1186 = vmatpush1.msra.mxu0 %v252
  %1187 = vmatprep.subr.mxu0 0.0
  %1188 = vmatpush1.msra.mxu0 %v253
  %1189 = vmatprep.subr.mxu0 0.0
  %1190 = vmatpush1.msra.mxu0 %v254
  %1191 = vmatprep.subr.mxu0 0.0
  %1192 = vmatpush1.msra.mxu0 %v255
  %1193 = vmatprep.subr.mxu0 0.0
  %1194 = vmatpush1.msra.mxu0 0.0
  %1195 = vmatprep.subr.mxu0 0.0
  %1196 = vmatpush1.msra.mxu0 0.0
  %1197 = vmatprep.subr.mxu0 0.0
  %1198 = vmatpush1.msra.mxu0 0.0
  %1199 = vmatprep.subr.mxu0 0.0
  %1200 = vmatpush1.msra.mxu0 0.0
  %1201 = vmatprep.subr.mxu0 0.0
  %1202 = vmatpush1.msra.mxu0 0.0
  %1203 = vmatprep.subr.mxu0 0.0
  %1204 = vmatpush1.msra.mxu0 0.0
  %1205 = vmatprep.subr.mxu0 0.0
  %1206 = vmatpush1.msra.mxu0 0.0
  %1207 = vmatprep.subr.mxu0 0.0
  %1208 = vmatpush1.msra.mxu0 0.0
  %1209 = vmatprep.subr.mxu0 0.0
  %1210 = vmatpush1.msra.mxu0 0.0
  %1211 = vmatprep.subr.mxu0 0.0
  %1212 = vmatpush1.msra.mxu0 0.0
  %1213 = vmatprep.subr.mxu0 0.0
  %1214 = vmatpush1.msra.mxu0 0.0
  %1215 = vmatprep.subr.mxu0 0.0
  %1216 = vmatpush1.msra.mxu0 0.0
  %1217 = vmatprep.subr.mxu0 0.0
  %1218 = vmatpush1.msra.mxu0 0.0
  %1219 = vmatprep.subr.mxu0 0.0
  %1220 = vmatpush1.msra.mxu0 0.0
  %1221 = vmatprep.subr.mxu0 0.0
  %1222 = vmatpush1.msra.mxu0 0.0
  %1223 = vmatprep.subr.mxu0 0.0
  %1224 = vmatpush1.msra.mxu0 0.0
  %1225 = vmatprep.subr.mxu0 0.0
  %1226 = vmatpush1.msra.mxu0 0.0
  %1227 = vmatprep.subr.mxu0 0.0
  %1228 = vmatpush1.msra.mxu0 0.0
  %1229 = vmatprep.subr.mxu0 0.0
  %1230 = vmatpush1.msra.mxu0 0.0
  %1231 = vmatprep.subr.mxu0 0.0
  %1232 = vmatpush1.msra.mxu0 0.0
  %1233 = vmatprep.subr.mxu0 0.0
  %1234 = vmatpush1.msra.mxu0 0.0
  %1235 = vmatprep.subr.mxu0 0.0
  %1236 = vmatpush1.msra.mxu0 0.0
  %1237 = vmatprep.subr.mxu0 0.0
  %1238 = vmatpush1.msra.mxu0 0.0
  %1239 = vmatprep.subr.mxu0 0.0
  %1240 = vmatpush1.msra.mxu0 0.0
  %1241 = vmatprep.subr.mxu0 0.0
  %1242 = vmatpush1.msra.mxu0 0.0
  %1243 = vmatprep.subr.mxu0 0.0
  %1244 = vmatpush1.msra.mxu0 0.0
  %1245 = vmatprep.subr.mxu0 0.0
  %1246 = vmatpush1.msra.mxu0 0.0
  %1247 = vmatprep.subr.mxu0 0.0
  %1248 = vmatpush1.msra.mxu0 0.0
  %1249 = vmatprep.mubr.f32.mxu0 0.0
  %1250 = vmatmul.mubr.f32.gmra.mrb[0].mxu0 %v1183
  %v1251 = vpop.f32.mrb[0].mxu0
  %v1252 = vadd.f32 0.0, %v1251
  %v1253 = vpop.f32.mrb[0].mxu0
  %1254 = vdwg.mxu0
  %1256 = vrot.lane.b32.xlu0 %v1252, 32
  %v1257 = vpop.permute.xlu0 %1256
  %v1259 = vadd.f32 %v230, %v1257
  %v1260 = vtanh.pop %v1259
  %1262 = vrot.lane.b32.xlu0 %v1260, 96
  %v1263 = vpop.permute.xlu0 %1262
  %v1264 = vsel %vm257, %v1263, 0
  %1266 = vmatprep.subr.mxu0 0.0
  %1267 = vmatpush1.msra.mxu0 %v252
  %1268 = vmatprep.subr.mxu0 0.0
  %1269 = vmatpush1.msra.mxu0 %v253
  %1270 = vmatprep.subr.mxu0 0.0
  %1271 = vmatpush1.msra.mxu0 %v254
  %1272 = vmatprep.subr.mxu0 0.0
  %1273 = vmatpush1.msra.mxu0 %v255
  %1274 = vmatprep.subr.mxu0 0.0
  %1275 = vmatpush1.msra.mxu0 0.0
  %1276 = vmatprep.subr.mxu0 0.0
  %1277 = vmatpush1.msra.mxu0 0.0
  %1278 = vmatprep.subr.mxu0 0.0
  %1279 = vmatpush1.msra.mxu0 0.0
  %1280 = vmatprep.subr.mxu0 0.0
  %1281 = vmatpush1.msra.mxu0 0.0
  %1282 = vmatprep.subr.mxu0 0.0
  %1283 = vmatpush1.msra.mxu0 0.0
  %1284 = vmatprep.subr.mxu0 0.0
  %1285 = vmatpush1.msra.mxu0 0.0
  %1286 = vmatprep.subr.mxu0 0.0
  %1287 = vmatpush1.msra.mxu0 0.0
  %1288 = vmatprep.subr.mxu0 0.0
  %1289 = vmatpush1.msra.mxu0 0.0
  %1290 = vmatprep.subr.mxu0 0.0
  %1291 = vmatpush1.msra.mxu0 0.0
  %1292 = vmatprep.subr.mxu0 0.0
  %1293 = vmatpush1.msra.mxu0 0.0
  %1294 = vmatprep.subr.mxu0 0.0
  %1295 = vmatpush1.msra.mxu0 0.0
  %1296 = vmatprep.subr.mxu0 0.0
  %1297 = vmatpush1.msra.mxu0 0.0
  %1298 = vmatprep.subr.mxu0 0.0
  %1299 = vmatpush1.msra.mxu0 0.0
  %1300 = vmatprep.subr.mxu0 0.0
  %1301 = vmatpush1.msra.mxu0 0.0
  %1302 = vmatprep.subr.mxu0 0.0
  %1303 = vmatpush1.msra.mxu0 0.0
  %1304 = vmatprep.subr.mxu0 0.0
  %1305 = vmatpush1.msra.mxu0 0.0
  %1306 = vmatprep.subr.mxu0 0.0
  %1307 = vmatpush1.msra.mxu0 0.0
  %1308 = vmatprep.subr.mxu0 0.0
  %1309 = vmatpush1.msra.mxu0 0.0
  %1310 = vmatprep.subr.mxu0 0.0
  %1311 = vmatpush1.msra.mxu0 0.0
  %1312 = vmatprep.subr.mxu0 0.0
  %1313 = vmatpush1.msra.mxu0 0.0
  %1314 = vmatprep.subr.mxu0 0.0
  %1315 = vmatpush1.msra.mxu0 0.0
  %1316 = vmatprep.subr.mxu0 0.0
  %1317 = vmatpush1.msra.mxu0 0.0
  %1318 = vmatprep.subr.mxu0 0.0
  %1319 = vmatpush1.msra.mxu0 0.0
  %1320 = vmatprep.subr.mxu0 0.0
  %1321 = vmatpush1.msra.mxu0 0.0
  %1322 = vmatprep.subr.mxu0 0.0
  %1323 = vmatpush1.msra.mxu0 0.0
  %1324 = vmatprep.subr.mxu0 0.0
  %1325 = vmatpush1.msra.mxu0 0.0
  %1326 = vmatprep.subr.mxu0 0.0
  %1327 = vmatpush1.msra.mxu0 0.0
  %1328 = vmatprep.subr.mxu0 0.0
  %1329 = vmatpush1.msra.mxu0 0.0
  %1330 = vmatprep.mubr.f32.mxu0 0.0
  %1331 = vmatmul.mubr.f32.gmra.mrb[0].mxu0 %v1264
  %v1332 = vpop.f32.mrb[0].mxu0
  %v1333 = vadd.f32 0.0, %v1332
  %v1334 = vpop.f32.mrb[0].mxu0
  %1335 = vdwg.mxu0
  %1337 = vrot.lane.b32.xlu0 %v1333, 32
  %v1338 = vpop.permute.xlu0 %1337
  %v1340 = vadd.f32 %v235, %v1338
  %v1341 = vtanh.pop %v1340
  %1343 = vrot.lane.b32.xlu0 %v1341, 96
  %v1344 = vpop.permute.xlu0 %1343
  %v1345 = vsel %vm257, %v1344, 0
  %1347 = vmatprep.subr.mxu0 0.0
  %1348 = vmatpush1.msra.mxu0 %v252
  %1349 = vmatprep.subr.mxu0 0.0
  %1350 = vmatpush1.msra.mxu0 %v253
  %1351 = vmatprep.subr.mxu0 0.0
  %1352 = vmatpush1.msra.mxu0 %v254
  %1353 = vmatprep.subr.mxu0 0.0
  %1354 = vmatpush1.msra.mxu0 %v255
  %1355 = vmatprep.subr.mxu0 0.0
  %1356 = vmatpush1.msra.mxu0 0.0
  %1357 = vmatprep.subr.mxu0 0.0
  %1358 = vmatpush1.msra.mxu0 0.0
  %1359 = vmatprep.subr.mxu0 0.0
  %1360 = vmatpush1.msra.mxu0 0.0
  %1361 = vmatprep.subr.mxu0 0.0
  %1362 = vmatpush1.msra.mxu0 0.0
  %1363 = vmatprep.subr.mxu0 0.0
  %1364 = vmatpush1.msra.mxu0 0.0
  %1365 = vmatprep.subr.mxu0 0.0
  %1366 = vmatpush1.msra.mxu0 0.0
  %1367 = vmatprep.subr.mxu0 0.0
  %1368 = vmatpush1.msra.mxu0 0.0
  %1369 = vmatprep.subr.mxu0 0.0
  %1370 = vmatpush1.msra.mxu0 0.0
  %1371 = vmatprep.subr.mxu0 0.0
  %1372 = vmatpush1.msra.mxu0 0.0
  %1373 = vmatprep.subr.mxu0 0.0
  %1374 = vmatpush1.msra.mxu0 0.0
  %1375 = vmatprep.subr.mxu0 0.0
  %1376 = vmatpush1.msra.mxu0 0.0
  %1377 = vmatprep.subr.mxu0 0.0
  %1378 = vmatpush1.msra.mxu0 0.0
  %1379 = vmatprep.subr.mxu0 0.0
  %1380 = vmatpush1.msra.mxu0 0.0
  %1381 = vmatprep.subr.mxu0 0.0
  %1382 = vmatpush1.msra.mxu0 0.0
  %1383 = vmatprep.subr.mxu0 0.0
  %1384 = vmatpush1.msra.mxu0 0.0
  %1385 = vmatprep.subr.mxu0 0.0
  %1386 = vmatpush1.msra.mxu0 0.0
  %1387 = vmatprep.subr.mxu0 0.0
  %1388 = vmatpush1.msra.mxu0 0.0
  %1389 = vmatprep.subr.mxu0 0.0
  %1390 = vmatpush1.msra.mxu0 0.0
  %1391 = vmatprep.subr.mxu0 0.0
  %1392 = vmatpush1.msra.mxu0 0.0
  %1393 = vmatprep.subr.mxu0 0.0
  %1394 = vmatpush1.msra.mxu0 0.0
  %1395 = vmatprep.subr.mxu0 0.0
  %1396 = vmatpush1.msra.mxu0 0.0
  %1397 = vmatprep.subr.mxu0 0.0
  %1398 = vmatpush1.msra.mxu0 0.0
  %1399 = vmatprep.subr.mxu0 0.0
  %1400 = vmatpush1.msra.mxu0 0.0
  %1401 = vmatprep.subr.mxu0 0.0
  %1402 = vmatpush1.msra.mxu0 0.0
  %1403 = vmatprep.subr.mxu0 0.0
  %1404 = vmatpush1.msra.mxu0 0.0
  %1405 = vmatprep.subr.mxu0 0.0
  %1406 = vmatpush1.msra.mxu0 0.0
  %1407 = vmatprep.subr.mxu0 0.0
  %1408 = vmatpush1.msra.mxu0 0.0
  %1409 = vmatprep.subr.mxu0 0.0
  %1410 = vmatpush1.msra.mxu0 0.0
  %1411 = vmatprep.mubr.f32.mxu0 0.0
  %1412 = vmatmul.mubr.f32.gmra.mrb[0].mxu0 %v1345
  %v1413 = vpop.f32.mrb[0].mxu0
  %v1414 = vadd.f32 0.0, %v1413
  %v1415 = vpop.f32.mrb[0].mxu0
  %1416 = vdwg.mxu0
  %1418 = vrot.lane.b32.xlu0 %v1414, 32
  %v1419 = vpop.permute.xlu0 %1418
  %v1421 = vadd.f32 %v240, %v1419
  %v1422 = vtanh.pop %v1421
  %1424 = vrot.lane.b32.xlu0 %v1422, 96
  %v1425 = vpop.permute.xlu0 %1424
  %v1426 = vsel %vm257, %v1425, 0
  %1428 = vmatprep.subr.mxu0 0.0
  %1429 = vmatpush1.msra.mxu0 %v252
  %1430 = vmatprep.subr.mxu0 0.0
  %1431 = vmatpush1.msra.mxu0 %v253
  %1432 = vmatprep.subr.mxu0 0.0
  %1433 = vmatpush1.msra.mxu0 %v254
  %1434 = vmatprep.subr.mxu0 0.0
  %1435 = vmatpush1.msra.mxu0 %v255
  %1436 = vmatprep.subr.mxu0 0.0
  %1437 = vmatpush1.msra.mxu0 0.0
  %1438 = vmatprep.subr.mxu0 0.0
  %1439 = vmatpush1.msra.mxu0 0.0
  %1440 = vmatprep.subr.mxu0 0.0
  %1441 = vmatpush1.msra.mxu0 0.0
  %1442 = vmatprep.subr.mxu0 0.0
  %1443 = vmatpush1.msra.mxu0 0.0
  %1444 = vmatprep.subr.mxu0 0.0
  %1445 = vmatpush1.msra.mxu0 0.0
  %1446 = vmatprep.subr.mxu0 0.0
  %1447 = vmatpush1.msra.mxu0 0.0
  %1448 = vmatprep.subr.mxu0 0.0
  %1449 = vmatpush1.msra.mxu0 0.0
  %1450 = vmatprep.subr.mxu0 0.0
  %1451 = vmatpush1.msra.mxu0 0.0
  %1452 = vmatprep.subr.mxu0 0.0
  %1453 = vmatpush1.msra.mxu0 0.0
  %1454 = vmatprep.subr.mxu0 0.0
  %1455 = vmatpush1.msra.mxu0 0.0
  %1456 = vmatprep.subr.mxu0 0.0
  %1457 = vmatpush1.msra.mxu0 0.0
  %1458 = vmatprep.subr.mxu0 0.0
  %1459 = vmatpush1.msra.mxu0 0.0
  %1460 = vmatprep.subr.mxu0 0.0
  %1461 = vmatpush1.msra.mxu0 0.0
  %1462 = vmatprep.subr.mxu0 0.0
  %1463 = vmatpush1.msra.mxu0 0.0
  %1464 = vmatprep.subr.mxu0 0.0
  %1465 = vmatpush1.msra.mxu0 0.0
  %1466 = vmatprep.subr.mxu0 0.0
  %1467 = vmatpush1.msra.mxu0 0.0
  %1468 = vmatprep.subr.mxu0 0.0
  %1469 = vmatpush1.msra.mxu0 0.0
  %1470 = vmatprep.subr.mxu0 0.0
  %1471 = vmatpush1.msra.mxu0 0.0
  %1472 = vmatprep.subr.mxu0 0.0
  %1473 = vmatpush1.msra.mxu0 0.0
  %1474 = vmatprep.subr.mxu0 0.0
  %1475 = vmatpush1.msra.mxu0 0.0
  %1476 = vmatprep.subr.mxu0 0.0
  %1477 = vmatpush1.msra.mxu0 0.0
  %1478 = vmatprep.subr.mxu0 0.0
  %1479 = vmatpush1.msra.mxu0 0.0
  %1480 = vmatprep.subr.mxu0 0.0
  %1481 = vmatpush1.msra.mxu0 0.0
  %1482 = vmatprep.subr.mxu0 0.0
  %1483 = vmatpush1.msra.mxu0 0.0
  %1484 = vmatprep.subr.mxu0 0.0
  %1485 = vmatpush1.msra.mxu0 0.0
  %1486 = vmatprep.subr.mxu0 0.0
  %1487 = vmatpush1.msra.mxu0 0.0
  %1488 = vmatprep.subr.mxu0 0.0
  %1489 = vmatpush1.msra.mxu0 0.0
  %1490 = vmatprep.subr.mxu0 0.0
  %1491 = vmatpush1.msra.mxu0 0.0
  %1492 = vmatprep.mubr.f32.mxu0 0.0
  %1493 = vmatmul.mubr.f32.gmra.mrb[0].mxu0 %v1426
  %v1494 = vpop.f32.mrb[0].mxu0
  %v1495 = vadd.f32 0.0, %v1494
  %v1496 = vpop.f32.mrb[0].mxu0
  %1497 = vdwg.mxu0
  %1499 = vrot.lane.b32.xlu0 %v1495, 32
  %v1500 = vpop.permute.xlu0 %1499
  %v1502 = vadd.f32 %v245, %v1500
  %v1503 = vtanh.pop %v1502
  %v1504 = vld [vmem:[%s6] sm:$0xff]
  %v1505 = vld [vmem:[%s6 + $0x8] sm:$0xff]
  %v1506 = vld [vmem:[%s6 + $0x10] sm:$0xff]
  %v1507 = vld [vmem:[%s6 + $0x18] sm:$0xff]
  %v1508 = vld [vmem:[%s7] sm:$0x1]
  %v1510 = vlaneseq
  %v1511 = vshrl.u32 %v1510, 7
  %v1512 = vsub.s32 0, %v1511
  %v1513 = vrot.slane %v1508, %v1512
  %1516 = vrot.lane.b32.xlu0 %v1503, 96
  %v1517 = vpop.permute.xlu0 %1516
  %v1518 = vsel %vm257, %v1517, 0
  %1520 = vmatprep.subr.mxu0 0.0
  %1521 = vmatpush1.msra.mxu0 %v1504
  %1522 = vmatprep.subr.mxu0 0.0
  %1523 = vmatpush1.msra.mxu0 %v1505
  %1524 = vmatprep.subr.mxu0 0.0
  %1525 = vmatpush1.msra.mxu0 %v1506
  %1526 = vmatprep.subr.mxu0 0.0
  %1527 = vmatpush1.msra.mxu0 %v1507
  %1528 = vmatprep.subr.mxu0 0.0
  %1529 = vmatpush1.msra.mxu0 0.0
  %1530 = vmatprep.subr.mxu0 0.0
  %1531 = vmatpush1.msra.mxu0 0.0
  %1532 = vmatprep.subr.mxu0 0.0
  %1533 = vmatpush1.msra.mxu0 0.0
  %1534 = vmatprep.subr.mxu0 0.0
  %1535 = vmatpush1.msra.mxu0 0.0
  %1536 = vmatprep.subr.mxu0 0.0
  %1537 = vmatpush1.msra.mxu0 0.0
  %1538 = vmatprep.subr.mxu0 0.0
  %1539 = vmatpush1.msra.mxu0 0.0
  %1540 = vmatprep.subr.mxu0 0.0
  %1541 = vmatpush1.msra.mxu0 0.0
  %1542 = vmatprep.subr.mxu0 0.0
  %1543 = vmatpush1.msra.mxu0 0.0
  %1544 = vmatprep.subr.mxu0 0.0
  %1545 = vmatpush1.msra.mxu0 0.0
  %1546 = vmatprep.subr.mxu0 0.0
  %1547 = vmatpush1.msra.mxu0 0.0
  %1548 = vmatprep.subr.mxu0 0.0
  %1549 = vmatpush1.msra.mxu0 0.0
  %1550 = vmatprep.subr.mxu0 0.0
  %1551 = vmatpush1.msra.mxu0 0.0
  %1552 = vmatprep.subr.mxu0 0.0
  %1553 = vmatpush1.msra.mxu0 0.0
  %1554 = vmatprep.subr.mxu0 0.0
  %1555 = vmatpush1.msra.mxu0 0.0
  %1556 = vmatprep.subr.mxu0 0.0
  %1557 = vmatpush1.msra.mxu0 0.0
  %1558 = vmatprep.subr.mxu0 0.0
  %1559 = vmatpush1.msra.mxu0 0.0
  %1560 = vmatprep.subr.mxu0 0.0
  %1561 = vmatpush1.msra.mxu0 0.0
  %1562 = vmatprep.subr.mxu0 0.0
  %1563 = vmatpush1.msra.mxu0 0.0
  %1564 = vmatprep.subr.mxu0 0.0
  %1565 = vmatpush1.msra.mxu0 0.0
  %1566 = vmatprep.subr.mxu0 0.0
  %1567 = vmatpush1.msra.mxu0 0.0
  %1568 = vmatprep.subr.mxu0 0.0
  %1569 = vmatpush1.msra.mxu0 0.0
  %1570 = vmatprep.subr.mxu0 0.0
  %1571 = vmatpush1.msra.mxu0 0.0
  %1572 = vmatprep.subr.mxu0 0.0
  %1573 = vmatpush1.msra.mxu0 0.0
  %1574 = vmatprep.subr.mxu0 0.0
  %1575 = vmatpush1.msra.mxu0 0.0
  %1576 = vmatprep.subr.mxu0 0.0
  %1577 = vmatpush1.msra.mxu0 0.0
  %1578 = vmatprep.subr.mxu0 0.0
  %1579 = vmatpush1.msra.mxu0 0.0
  %1580 = vmatprep.subr.mxu0 0.0
  %1581 = vmatpush1.msra.mxu0 0.0
  %1582 = vmatprep.subr.mxu0 0.0
  %1583 = vmatpush1.msra.mxu0 0.0
  %1584 = vmatprep.mubr.f32.mxu0 0.0
  %1585 = vmatmul.mubr.f32.gmra.mrb[0].mxu0 %v940
  %v1586 = vpop.f32.mrb[0].mxu0
  %v1587 = vadd.f32 %v1513, %v1586
  %v1588 = vpop.f32.mrb[0].mxu0
  %1589 = vmatprep.mubr.f32.mxu0 0.0
  %1590 = vmatmul.mubr.f32.gmra.mrb[0].mxu0 %v1021
  %v1591 = vpop.f32.mrb[0].mxu0
  %v1592 = vadd.f32 %v1513, %v1591
  %v1593 = vpop.f32.mrb[0].mxu0
  %1594 = vmatprep.mubr.f32.mxu0 0.0
  %1595 = vmatmul.mubr.f32.gmra.mrb[0].mxu0 %v1102
  %v1596 = vpop.f32.mrb[0].mxu0
  %v1597 = vadd.f32 %v1513, %v1596
  %v1598 = vpop.f32.mrb[0].mxu0
  %1599 = vmatprep.mubr.f32.mxu0 0.0
  %1600 = vmatmul.mubr.f32.gmra.mrb[0].mxu0 %v1183
  %v1601 = vpop.f32.mrb[0].mxu0
  %v1602 = vadd.f32 %v1513, %v1601
  %v1603 = vpop.f32.mrb[0].mxu0
  %1604 = vmatprep.mubr.f32.mxu0 0.0
  %1605 = vmatmul.mubr.f32.gmra.mrb[0].mxu0 %v1264
  %v1606 = vpop.f32.mrb[0].mxu0
  %v1607 = vadd.f32 %v1513, %v1606
  %v1608 = vpop.f32.mrb[0].mxu0
  %1609 = vmatprep.mubr.f32.mxu0 0.0
  %1610 = vmatmul.mubr.f32.gmra.mrb[0].mxu0 %v1345
  %v1611 = vpop.f32.mrb[0].mxu0
  %v1612 = vadd.f32 %v1513, %v1611
  %v1613 = vpop.f32.mrb[0].mxu0
  %1614 = vmatprep.mubr.f32.mxu0 0.0
  %1615 = vmatmul.mubr.f32.gmra.mrb[0].mxu0 %v1426
  %v1616 = vpop.f32.mrb[0].mxu0
  %v1617 = vadd.f32 %v1513, %v1616
  %v1618 = vpop.f32.mrb[0].mxu0
  %1619 = vmatprep.mubr.f32.mxu0 0.0
  %1620 = vmatmul.mubr.f32.gmra.mrb[0].mxu0 %v1518
  %v1621 = vpop.f32.mrb[0].mxu0
  %v1622 = vadd.f32 %v1513, %v1621
  %v1623 = vpop.f32.mrb[0].mxu0
  %1624 = vdwg.mxu0
  %1625 = vst [vmem:[%s8] sm:$0xff] %v1587
  %1626 = vst [vmem:[%s8 + $0x8] sm:$0xff] %v1592
  %1627 = vst [vmem:[%s8 + $0x10] sm:$0xff] %v1597
  %1628 = vst [vmem:[%s8 + $0x18] sm:$0xff] %v1602
  %1629 = vst [vmem:[%s8 + $0x20] sm:$0xff] %v1607
  %1630 = vst [vmem:[%s8 + $0x28] sm:$0xff] %v1612
  %1631 = vst [vmem:[%s8 + $0x30] sm:$0xff] %v1617
  %1632 = vst [vmem:[%s8 + $0x38] sm:$0xff] %v1622
  // Predicated region
  $region34: #{seq2seq_forward.1} parent=0 // pred_check
    _
  $region35: #{seq2seq_forward.1} parent=0 // pred_check_branch
    %1634 = sbr.rel (0) target = $region37
  $region36: #{seq2seq_forward.1} parent=0 // pred_region
    _
  $region37: #{seq2seq_forward.1} parent=0 // pred_fallthru
    _
  // Predicated region
  $region38: #{seq2seq_forward.1} parent=0 // pred_check
    _
  $region39: #{seq2seq_forward.1} parent=0 // pred_check_branch
    %1636 = sbr.rel (0) target = $region41
  $region40: #{seq2seq_forward.1} parent=0 // pred_region
    _
  $region41: #{seq2seq_forward.1} parent=0 // pred_fallthru
    _

</llo_original>
